<compile_context>
chip_gen: v5e
topology: v5e:2x2
jax: 0.10.0
libtpu: 0.0.40
codegen_flags: <defaults>
</compile_context>

<pallas_src>
import math

import jax
import jax.numpy as jnp
import numpy as np
from jax import lax
from jax.experimental import pallas as pl
from jax.experimental.pallas import tpu as pltpu


def bilstm_fused_kernel(xp_ref, whhf_ref, whhb_ref, wihf_ref, wihb_ref,
                        bf_ref, bb_ref, wattf_ref, wattb_ref,
                        out_ref, xpf_ref, xpb_ref, hfseq_ref, hbseq_ref):
    T, B, H = hfseq_ref.shape          # (time, batch, hidden-per-direction)

    # ---- prologue: hoisted input projection + bias (carry-independent) -------
    # xp rows are (t, b)-flattened; col 0 = x[t, b], col 1 = x[T-1-t, b].
    # (T*B, 4H) = (16, 128) is fully sublane/lane dense: 2 vregs per direction.
    xp = xp_ref[...]                                        # (T*B, 2)
    xpf_ref[...] = xp[:, 0:1] * wihf_ref[...] + bf_ref[...]  # (T*B, 4H)
    xpb_ref[...] = xp[:, 1:2] * wihb_ref[...] + bb_ref[...]  # (T*B, 4H)

    # ---- fused bidirectional recurrence, fully unrolled (T static & tiny) ----
    # Gate column order per direction is [i | f | o | g] (each H wide) so one
    # sigmoid slab covers i/f/o (the g columns are dead-but-harmless work that
    # avoids an extra lane slice) and one H-wide tanh covers the cell candidate.
    h_f = jnp.zeros((B, H), jnp.float32)
    c_f = jnp.zeros((B, H), jnp.float32)
    h_b = jnp.zeros((B, H), jnp.float32)
    c_b = jnp.zeros((B, H), jnp.float32)

    for s in range(T):
        row = s * B
        # Weights are re-read from VMEM each step (static address, 4 vregs each)
        # so nothing large stays live across the unrolled steps (review item 8).
        gf = xpf_ref[row:row + B, :] + jnp.dot(
            h_f, whhf_ref[...], preferred_element_type=jnp.float32)   # (B, 4H)
        gb = xpb_ref[row:row + B, :] + jnp.dot(
            h_b, whhb_ref[...], preferred_element_type=jnp.float32)   # (B, 4H)

        sf = jax.nn.sigmoid(gf)                     # i/f/o for forward direction
        sb = jax.nn.sigmoid(gb)                     # i/f/o for backward direction
        gfa = jnp.tanh(gf[:, 3 * H:])               # (B, H) fwd cell candidate
        gba = jnp.tanh(gb[:, 3 * H:])               # (B, H) bwd cell candidate

        c_f = sf[:, H:2 * H] * c_f + sf[:, :H] * gfa
        c_b = sb[:, H:2 * H] * c_b + sb[:, :H] * gba
        h_f = sf[:, 2 * H:3 * H] * jnp.tanh(c_f)
        h_b = sb[:, 2 * H:3 * H] * jnp.tanh(c_b)

        # Direction-direct stores (no lane slicing of a fused h). The backward
        # hidden is stored already time-aligned so the epilogue needs no reverse.
        hfseq_ref[s] = h_f                          # forward hidden at time s
        hbseq_ref[T - 1 - s] = h_b                  # backward hidden at time T-1-s

    # ---- attention epilogue: softmax over the batch axis (PyTorch dim=1) -----
    hf = hfseq_ref[...]                             # (T, B, H)
    hb = hbseq_ref[...]                             # (T, B, H), time-aligned
    scores = jnp.tanh(jnp.sum(hf * wattf_ref[...], axis=-1, keepdims=True)
                      + jnp.sum(hb * wattb_ref[...], axis=-1, keepdims=True))  # (T,B,1)
    m = jnp.max(scores, axis=1, keepdims=True)
    e = jnp.exp(scores - m)
    # reciprocal on the EUP (free slot) instead of a VALU divide (review item 7).
    a = e * pl.reciprocal(jnp.sum(e, axis=1, keepdims=True), approx=True)  # (T,B,1)

    # output = sum over batch of a * [hf | hb]  -> (T, 2H), two half-width stores
    out_ref[:, 0:H] = jnp.sum(a * hf, axis=1)
    out_ref[:, H:2 * H] = jnp.sum(a * hb, axis=1)


def make_params(key, ninput, nhid):
    assert ninput == 1, "forward() unsqueezes the last dim, so input_size must be 1"
    H = nhid
    k_lstm = 1.0 / math.sqrt(H)
    k_lin = 1.0 / math.sqrt(2 * H)
    keys = jax.random.split(key, 9)
    u = lambda k, shape, bound: jax.random.uniform(k, shape, jnp.float32, -bound, bound)
    return dict(
        w_ih_f=u(keys[0], (4 * H, ninput), k_lstm),
        w_hh_f=u(keys[1], (4 * H, H), k_lstm),
        b_ih_f=u(keys[2], (4 * H,), k_lstm),
        b_hh_f=u(keys[3], (4 * H,), k_lstm),
        w_ih_b=u(keys[4], (4 * H, ninput), k_lstm),
        w_hh_b=u(keys[5], (4 * H, H), k_lstm),
        b_ih_b=u(keys[6], (4 * H,), k_lstm),
        b_hh_b=u(keys[7], (4 * H,), k_lstm),
        w_att=u(keys[8], (1, 2 * H), k_lin),   # nn.Linear(2H, 1, bias=False).weight
    )


def bilstm_forward(x, params, nhid):
    """Wrapper: reorders each direction's LSTM weights into the kernel's fused
    (i, f, o, g) column layout (pure layout plumbing, done once).  The two
    directions stay separate (H, 4H) matrices -> no block-diagonal zero padding."""
    T, B = x.shape
    H = nhid

    # PyTorch gate row blocks are (i, f, g, o); kernel column order is (i, f, o, g)
    # so the sigmoid covers a prefix and the tanh only the last H-wide block.
    ORDER = (0, 1, 3, 2)

    def fuse_direction(w_hh, w_ih, b):
        whh = jnp.concatenate([w_hh[p * H:(p + 1) * H].T for p in ORDER], axis=1)  # (H, 4H)
        wih = jnp.concatenate([w_ih[p * H:(p + 1) * H, 0] for p in ORDER]).reshape(1, 4 * H)
        bias = jnp.concatenate([b[p * H:(p + 1) * H] for p in ORDER]).reshape(1, 4 * H)
        return whh, wih, bias

    whh_f, wih_f, b_f = fuse_direction(
        params['w_hh_f'], params['w_ih_f'], params['b_ih_f'] + params['b_hh_f'])
    whh_b, wih_b, b_b = fuse_direction(
        params['w_hh_b'], params['w_ih_b'], params['b_ih_b'] + params['b_hh_b'])

    xf = x.astype(jnp.float32)
    # (T*B, 2): col 0 = x[t, b], col 1 = x[T-1-t, b] (time reversal baked in).
    x_pair = jnp.stack([xf, xf[::-1]], axis=-1).reshape(T * B, 2)

    watt_f = params['w_att'][:, :H]                 # (1, H)
    watt_b = params['w_att'][:, H:]                 # (1, H)

    vmem = pl.BlockSpec(memory_space=pltpu.MemorySpace.VMEM)
    # TODO(synk): for a real multi-sequence workload, batch sequences into the
    # matmul M dimension and add a leading "parallel" grid axis (uses v7x's
    # second TensorCore and amortizes dispatch); a single (T=8, B=2) call has
    # nothing to split.
    return pl.pallas_call(
        bilstm_fused_kernel,
        out_shape=jax.ShapeDtypeStruct((T, 2 * H), jnp.float32),
        in_specs=[vmem] * 9,
        out_specs=vmem,
        scratch_shapes=[
            pltpu.VMEM((T * B, 4 * H), jnp.float32),   # forward input projection (dense 2-D)
            pltpu.VMEM((T * B, 4 * H), jnp.float32),   # backward input projection (dense 2-D)
            pltpu.VMEM((T, B, H), jnp.float32),        # forward hidden sequence
            pltpu.VMEM((T, B, H), jnp.float32),        # backward hidden sequence (time-aligned)
        ],
    )(x_pair, whh_f, whh_b, wih_f, wih_b, b_f, b_b, watt_f, watt_b)


def bilstm_reference(x, params, nhid):
    """Pure-JAX reference of the PyTorch forward (for correctness checking)."""
    H = nhid
    xin = x[..., None].astype(jnp.float32)
    T, B, _ = xin.shape

    def run(w_ih, w_hh, b_ih, b_hh, reverse):
        def step(carry, x_t):
            h, c = carry
            gates = x_t @ w_ih.T + h @ w_hh.T + b_ih + b_hh
            i = jax.nn.sigmoid(gates[:, :H])
            f = jax.nn.sigmoid(gates[:, H:2 * H])
            g = jnp.tanh(gates[:, 2 * H:3 * H])
            o = jax.nn.sigmoid(gates[:, 3 * H:])
            c = f * c + i * g
            h = o * jnp.tanh(c)
            return (h, c), h

        xs = xin[::-1] if reverse else xin
        init = (jnp.zeros((B, H), jnp.float32), jnp.zeros((B, H), jnp.float32))
        _, hs = lax.scan(step, init, xs)
        return hs[::-1] if reverse else hs

    hf = run(params['w_ih_f'], params['w_hh_f'], params['b_ih_f'], params['b_hh_f'], False)
    hb = run(params['w_ih_b'], params['w_hh_b'], params['b_ih_b'], params['b_hh_b'], True)
    h = jnp.concatenate([hf, hb], axis=-1)                       # (T, B, 2H)
    s = jnp.tanh(h @ params['w_att'].T)                          # (T, B, 1)
    a = jax.nn.softmax(s, axis=1)                                # softmax over batch dim
    return jnp.sum(a * h, axis=1)                                # (T, 2H)


if __name__ == "__main__":
    T, B, ninput, nhid = 8, 2, 1, 32
    key = jax.random.PRNGKey(0)
    kx, kp = jax.random.split(key)
    x = jax.random.normal(kx, (T, B), jnp.float32)
    params = make_params(kp, ninput, nhid)

    out = jax.block_until_ready(bilstm_forward(x, params, nhid))
    ref = jax.block_until_ready(bilstm_reference(x, params, nhid))

    assert out.shape == (T, 2 * nhid)
    np.testing.assert_allclose(np.asarray(out), np.asarray(ref), rtol=2e-3, atol=2e-3)
    print("KERNEL_OK")
</pallas_src>

<mosaic_0001>
module attributes {stable_mosaic.version = 11 : i64} {
  func.func @bilstm_fused_kernel(%arg0: memref<16x2xf32, #tpu.memory_space<vmem>>, %arg1: memref<32x128xf32, #tpu.memory_space<vmem>>, %arg2: memref<32x128xf32, #tpu.memory_space<vmem>>, %arg3: memref<1x128xf32, #tpu.memory_space<vmem>>, %arg4: memref<1x128xf32, #tpu.memory_space<vmem>>, %arg5: memref<1x128xf32, #tpu.memory_space<vmem>>, %arg6: memref<1x128xf32, #tpu.memory_space<vmem>>, %arg7: memref<1x32xf32, #tpu.memory_space<vmem>>, %arg8: memref<1x32xf32, #tpu.memory_space<vmem>>, %arg9: memref<8x64xf32, #tpu.memory_space<vmem>>, %arg10: memref<16x128xf32, #tpu.memory_space<vmem>>, %arg11: memref<16x128xf32, #tpu.memory_space<vmem>>, %arg12: memref<8x2x32xf32, #tpu.memory_space<vmem>>, %arg13: memref<8x2x32xf32, #tpu.memory_space<vmem>>) attributes {dimension_semantics = [], scalar_prefetch = 0 : i64, scratch_operands = 4 : i64, tpu.core_type = #tpu.core_type<tc>} {
    %c0 = arith.constant 0 : index
    %c0_0 = arith.constant 0 : index
    %0 = vector.load %arg0[%c0, %c0_0] : memref<16x2xf32, #tpu.memory_space<vmem>>, vector<16x2xf32>
    %1 = vector.extract_strided_slice %0 {offsets = [0, 0], sizes = [16, 1], strides = [1, 1]} : vector<16x2xf32> to vector<16x1xf32>
    %c0_1 = arith.constant 0 : index
    %c0_2 = arith.constant 0 : index
    %2 = vector.load %arg3[%c0_1, %c0_2] : memref<1x128xf32, #tpu.memory_space<vmem>>, vector<1x128xf32>
    %3 = vector.broadcast %1 : vector<16x1xf32> to vector<16x128xf32>
    %4 = vector.broadcast %2 : vector<1x128xf32> to vector<16x128xf32>
    %5 = arith.mulf %3, %4 : vector<16x128xf32>
    %c0_3 = arith.constant 0 : index
    %c0_4 = arith.constant 0 : index
    %6 = vector.load %arg5[%c0_3, %c0_4] : memref<1x128xf32, #tpu.memory_space<vmem>>, vector<1x128xf32>
    %7 = vector.broadcast %6 : vector<1x128xf32> to vector<16x128xf32>
    %8 = arith.addf %5, %7 : vector<16x128xf32>
    %c0_5 = arith.constant 0 : index
    %c0_6 = arith.constant 0 : index
    %9 = vector.load %arg10[%c0_5, %c0_6] : memref<16x128xf32, #tpu.memory_space<vmem>>, vector<16x128xf32>
    tpu.vector_store %arg10[%c0_5, %c0_6], %8 {strides = array<i32>} : memref<16x128xf32, #tpu.memory_space<vmem>>, vector<16x128xf32>,
    %10 = vector.extract_strided_slice %0 {offsets = [0, 1], sizes = [16, 1], strides = [1, 1]} : vector<16x2xf32> to vector<16x1xf32>
    %c0_7 = arith.constant 0 : index
    %c0_8 = arith.constant 0 : index
    %11 = vector.load %arg4[%c0_7, %c0_8] : memref<1x128xf32, #tpu.memory_space<vmem>>, vector<1x128xf32>
    %12 = vector.broadcast %10 : vector<16x1xf32> to vector<16x128xf32>
    %13 = vector.broadcast %11 : vector<1x128xf32> to vector<16x128xf32>
    %14 = arith.mulf %12, %13 : vector<16x128xf32>
    %c0_9 = arith.constant 0 : index
    %c0_10 = arith.constant 0 : index
    %15 = vector.load %arg6[%c0_9, %c0_10] : memref<1x128xf32, #tpu.memory_space<vmem>>, vector<1x128xf32>
    %16 = vector.broadcast %15 : vector<1x128xf32> to vector<16x128xf32>
    %17 = arith.addf %14, %16 : vector<16x128xf32>
    %c0_11 = arith.constant 0 : index
    %c0_12 = arith.constant 0 : index
    %18 = vector.load %arg11[%c0_11, %c0_12] : memref<16x128xf32, #tpu.memory_space<vmem>>, vector<16x128xf32>
    tpu.vector_store %arg11[%c0_11, %c0_12], %17 {strides = array<i32>} : memref<16x128xf32, #tpu.memory_space<vmem>>, vector<16x128xf32>,
    %cst = arith.constant 0.000000e+00 : f32
    %19 = vector.broadcast %cst : f32 to vector<2x32xf32>
    %cst_13 = arith.constant 0.000000e+00 : f32
    %20 = vector.broadcast %cst_13 : f32 to vector<2x32xf32>
    %cst_14 = arith.constant 0.000000e+00 : f32
    %21 = vector.broadcast %cst_14 : f32 to vector<2x32xf32>
    %cst_15 = arith.constant 0.000000e+00 : f32
    %22 = vector.broadcast %cst_15 : f32 to vector<2x32xf32>
    %c0_16 = arith.constant 0 : index
    %c0_17 = arith.constant 0 : index
    %23 = vector.load %arg10[%c0_16, %c0_17] : memref<16x128xf32, #tpu.memory_space<vmem>>, vector<2x128xf32>
    %c0_18 = arith.constant 0 : index
    %c0_19 = arith.constant 0 : index
    %24 = vector.load %arg1[%c0_18, %c0_19] : memref<32x128xf32, #tpu.memory_space<vmem>>, vector<32x128xf32>
    %cst_20 = arith.constant dense<0.000000e+00> : vector<2x128xf32>
    %25 = tpu.matmul %19, %24, %cst_20 {dimension_numbers = #tpu.dot_dimension_numbers<[1], [0], [0], [1], [0, 0, 1, 1], [], []>} : vector<2x32xf32>, vector<32x128xf32>, vector<2x128xf32> -> vector<2x128xf32>
    %26 = arith.addf %23, %25 : vector<2x128xf32>
    %c0_21 = arith.constant 0 : index
    %c0_22 = arith.constant 0 : index
    %27 = vector.load %arg11[%c0_21, %c0_22] : memref<16x128xf32, #tpu.memory_space<vmem>>, vector<2x128xf32>
    %c0_23 = arith.constant 0 : index
    %c0_24 = arith.constant 0 : index
    %28 = vector.load %arg2[%c0_23, %c0_24] : memref<32x128xf32, #tpu.memory_space<vmem>>, vector<32x128xf32>
    %cst_25 = arith.constant dense<0.000000e+00> : vector<2x128xf32>
    %29 = tpu.matmul %21, %28, %cst_25 {dimension_numbers = #tpu.dot_dimension_numbers<[1], [0], [0], [1], [0, 0, 1, 1], [], []>} : vector<2x32xf32>, vector<32x128xf32>, vector<2x128xf32> -> vector<2x128xf32>
    %30 = arith.addf %27, %29 : vector<2x128xf32>
    %31 = arith.negf %26 : vector<2x128xf32>
    %32 = math.exp %31 : vector<2x128xf32>
    %cst_26 = arith.constant 1.000000e+00 : f32
    %33 = vector.broadcast %cst_26 : f32 to vector<2x128xf32>
    %34 = arith.addf %33, %32 : vector<2x128xf32>
    %35 = arith.divf %33, %34 : vector<2x128xf32>
    %36 = arith.negf %30 : vector<2x128xf32>
    %37 = math.exp %36 : vector<2x128xf32>
    %cst_27 = arith.constant 1.000000e+00 : f32
    %38 = vector.broadcast %cst_27 : f32 to vector<2x128xf32>
    %39 = arith.addf %38, %37 : vector<2x128xf32>
    %40 = arith.divf %38, %39 : vector<2x128xf32>
    %41 = vector.extract_strided_slice %26 {offsets = [0, 96], sizes = [2, 32], strides = [1, 1]} : vector<2x128xf32> to vector<2x32xf32>
    %42 = math.tanh %41 : vector<2x32xf32>
    %43 = vector.extract_strided_slice %30 {offsets = [0, 96], sizes = [2, 32], strides = [1, 1]} : vector<2x128xf32> to vector<2x32xf32>
    %44 = math.tanh %43 : vector<2x32xf32>
    %45 = vector.extract_strided_slice %35 {offsets = [0, 32], sizes = [2, 32], strides = [1, 1]} : vector<2x128xf32> to vector<2x32xf32>
    %46 = arith.mulf %45, %20 : vector<2x32xf32>
    %47 = vector.extract_strided_slice %35 {offsets = [0, 0], sizes = [2, 32], strides = [1, 1]} : vector<2x128xf32> to vector<2x32xf32>
    %48 = arith.mulf %47, %42 : vector<2x32xf32>
    %49 = arith.addf %46, %48 : vector<2x32xf32>
    %50 = vector.extract_strided_slice %40 {offsets = [0, 32], sizes = [2, 32], strides = [1, 1]} : vector<2x128xf32> to vector<2x32xf32>
    %51 = arith.mulf %50, %22 : vector<2x32xf32>
    %52 = vector.extract_strided_slice %40 {offsets = [0, 0], sizes = [2, 32], strides = [1, 1]} : vector<2x128xf32> to vector<2x32xf32>
    %53 = arith.mulf %52, %44 : vector<2x32xf32>
    %54 = arith.addf %51, %53 : vector<2x32xf32>
    %55 = vector.extract_strided_slice %35 {offsets = [0, 64], sizes = [2, 32], strides = [1, 1]} : vector<2x128xf32> to vector<2x32xf32>
    %56 = math.tanh %49 : vector<2x32xf32>
    %57 = arith.mulf %55, %56 : vector<2x32xf32>
    %58 = vector.extract_strided_slice %40 {offsets = [0, 64], sizes = [2, 32], strides = [1, 1]} : vector<2x128xf32> to vector<2x32xf32>
    %59 = math.tanh %54 : vector<2x32xf32>
    %60 = arith.mulf %58, %59 : vector<2x32xf32>
    %c0_28 = arith.constant 0 : index
    %c0_29 = arith.constant 0 : index
    %c0_30 = arith.constant 0 : index
    %61 = vector.load %arg12[%c0_28, %c0_29, %c0_30] : memref<8x2x32xf32, #tpu.memory_space<vmem>>, vector<1x2x32xf32>
    %62 = vector.shape_cast %61 : vector<1x2x32xf32> to vector<2x32xf32>
    %63 = vector.shape_cast %57 : vector<2x32xf32> to vector<1x2x32xf32>
    tpu.vector_store %arg12[%c0_28, %c0_29, %c0_30], %63 {strides = array<i32>} : memref<8x2x32xf32, #tpu.memory_space<vmem>>, vector<1x2x32xf32>,
    %c7 = arith.constant 7 : index
    %c0_31 = arith.constant 0 : index
    %c0_32 = arith.constant 0 : index
    %64 = vector.load %arg13[%c7, %c0_31, %c0_32] : memref<8x2x32xf32, #tpu.memory_space<vmem>>, vector<1x2x32xf32>
    %65 = vector.shape_cast %64 : vector<1x2x32xf32> to vector<2x32xf32>
    %66 = vector.shape_cast %60 : vector<2x32xf32> to vector<1x2x32xf32>
    tpu.vector_store %arg13[%c7, %c0_31, %c0_32], %66 {strides = array<i32>} : memref<8x2x32xf32, #tpu.memory_space<vmem>>, vector<1x2x32xf32>,
    %c2 = arith.constant 2 : index
    %c0_33 = arith.constant 0 : index
    %67 = vector.load %arg10[%c2, %c0_33] : memref<16x128xf32, #tpu.memory_space<vmem>>, vector<2x128xf32>
    %c0_34 = arith.constant 0 : index
    %c0_35 = arith.constant 0 : index
    %68 = vector.load %arg1[%c0_34, %c0_35] : memref<32x128xf32, #tpu.memory_space<vmem>>, vector<32x128xf32>
    %cst_36 = arith.constant dense<0.000000e+00> : vector<2x128xf32>
    %69 = tpu.matmul %57, %68, %cst_36 {dimension_numbers = #tpu.dot_dimension_numbers<[1], [0], [0], [1], [0, 0, 1, 1], [], []>} : vector<2x32xf32>, vector<32x128xf32>, vector<2x128xf32> -> vector<2x128xf32>
    %70 = arith.addf %67, %69 : vector<2x128xf32>
    %c2_37 = arith.constant 2 : index
    %c0_38 = arith.constant 0 : index
    %71 = vector.load %arg11[%c2_37, %c0_38] : memref<16x128xf32, #tpu.memory_space<vmem>>, vector<2x128xf32>
    %c0_39 = arith.constant 0 : index
    %c0_40 = arith.constant 0 : index
    %72 = vector.load %arg2[%c0_39, %c0_40] : memref<32x128xf32, #tpu.memory_space<vmem>>, vector<32x128xf32>
    %cst_41 = arith.constant dense<0.000000e+00> : vector<2x128xf32>
    %73 = tpu.matmul %60, %72, %cst_41 {dimension_numbers = #tpu.dot_dimension_numbers<[1], [0], [0], [1], [0, 0, 1, 1], [], []>} : vector<2x32xf32>, vector<32x128xf32>, vector<2x128xf32> -> vector<2x128xf32>
    %74 = arith.addf %71, %73 : vector<2x128xf32>
    %75 = arith.negf %70 : vector<2x128xf32>
    %76 = math.exp %75 : vector<2x128xf32>
    %cst_42 = arith.constant 1.000000e+00 : f32
    %77 = vector.broadcast %cst_42 : f32 to vector<2x128xf32>
    %78 = arith.addf %77, %76 : vector<2x128xf32>
    %79 = arith.divf %77, %78 : vector<2x128xf32>
    %80 = arith.negf %74 : vector<2x128xf32>
    %81 = math.exp %80 : vector<2x128xf32>
    %cst_43 = arith.constant 1.000000e+00 : f32
    %82 = vector.broadcast %cst_43 : f32 to vector<2x128xf32>
    %83 = arith.addf %82, %81 : vector<2x128xf32>
    %84 = arith.divf %82, %83 : vector<2x128xf32>
    %85 = vector.extract_strided_slice %70 {offsets = [0, 96], sizes = [2, 32], strides = [1, 1]} : vector<2x128xf32> to vector<2x32xf32>
    %86 = math.tanh %85 : vector<2x32xf32>
    %87 = vector.extract_strided_slice %74 {offsets = [0, 96], sizes = [2, 32], strides = [1, 1]} : vector<2x128xf32> to vector<2x32xf32>
    %88 = math.tanh %87 : vector<2x32xf32>
    %89 = vector.extract_strided_slice %79 {offsets = [0, 32], sizes = [2, 32], strides = [1, 1]} : vector<2x128xf32> to vector<2x32xf32>
    %90 = arith.mulf %89, %49 : vector<2x32xf32>
    %91 = vector.extract_strided_slice %79 {offsets = [0, 0], sizes = [2, 32], strides = [1, 1]} : vector<2x128xf32> to vector<2x32xf32>
    %92 = arith.mulf %91, %86 : vector<2x32xf32>
    %93 = arith.addf %90, %92 : vector<2x32xf32>
    %94 = vector.extract_strided_slice %84 {offsets = [0, 32], sizes = [2, 32], strides = [1, 1]} : vector<2x128xf32> to vector<2x32xf32>
    %95 = arith.mulf %94, %54 : vector<2x32xf32>
    %96 = vector.extract_strided_slice %84 {offsets = [0, 0], sizes = [2, 32], strides = [1, 1]} : vector<2x128xf32> to vector<2x32xf32>
    %97 = arith.mulf %96, %88 : vector<2x32xf32>
    %98 = arith.addf %95, %97 : vector<2x32xf32>
    %99 = vector.extract_strided_slice %79 {offsets = [0, 64], sizes = [2, 32], strides = [1, 1]} : vector<2x128xf32> to vector<2x32xf32>
    %100 = math.tanh %93 : vector<2x32xf32>
    %101 = arith.mulf %99, %100 : vector<2x32xf32>
    %102 = vector.extract_strided_slice %84 {offsets = [0, 64], sizes = [2, 32], strides = [1, 1]} : vector<2x128xf32> to vector<2x32xf32>
    %103 = math.tanh %98 : vector<2x32xf32>
    %104 = arith.mulf %102, %103 : vector<2x32xf32>
    %c1 = arith.constant 1 : index
    %c0_44 = arith.constant 0 : index
    %c0_45 = arith.constant 0 : index
    %105 = vector.load %arg12[%c1, %c0_44, %c0_45] : memref<8x2x32xf32, #tpu.memory_space<vmem>>, vector<1x2x32xf32>
    %106 = vector.shape_cast %105 : vector<1x2x32xf32> to vector<2x32xf32>
    %107 = vector.shape_cast %101 : vector<2x32xf32> to vector<1x2x32xf32>
    tpu.vector_store %arg12[%c1, %c0_44, %c0_45], %107 {strides = array<i32>} : memref<8x2x32xf32, #tpu.memory_space<vmem>>, vector<1x2x32xf32>,
    %c6 = arith.constant 6 : index
    %c0_46 = arith.constant 0 : index
    %c0_47 = arith.constant 0 : index
    %108 = vector.load %arg13[%c6, %c0_46, %c0_47] : memref<8x2x32xf32, #tpu.memory_space<vmem>>, vector<1x2x32xf32>
    %109 = vector.shape_cast %108 : vector<1x2x32xf32> to vector<2x32xf32>
    %110 = vector.shape_cast %104 : vector<2x32xf32> to vector<1x2x32xf32>
    tpu.vector_store %arg13[%c6, %c0_46, %c0_47], %110 {strides = array<i32>} : memref<8x2x32xf32, #tpu.memory_space<vmem>>, vector<1x2x32xf32>,
    %c4 = arith.constant 4 : index
    %c0_48 = arith.constant 0 : index
    %111 = vector.load %arg10[%c4, %c0_48] : memref<16x128xf32, #tpu.memory_space<vmem>>, vector<2x128xf32>
    %c0_49 = arith.constant 0 : index
    %c0_50 = arith.constant 0 : index
    %112 = vector.load %arg1[%c0_49, %c0_50] : memref<32x128xf32, #tpu.memory_space<vmem>>, vector<32x128xf32>
    %cst_51 = arith.constant dense<0.000000e+00> : vector<2x128xf32>
    %113 = tpu.matmul %101, %112, %cst_51 {dimension_numbers = #tpu.dot_dimension_numbers<[1], [0], [0], [1], [0, 0, 1, 1], [], []>} : vector<2x32xf32>, vector<32x128xf32>, vector<2x128xf32> -> vector<2x128xf32>
    %114 = arith.addf %111, %113 : vector<2x128xf32>
    %c4_52 = arith.constant 4 : index
    %c0_53 = arith.constant 0 : index
    %115 = vector.load %arg11[%c4_52, %c0_53] : memref<16x128xf32, #tpu.memory_space<vmem>>, vector<2x128xf32>
    %c0_54 = arith.constant 0 : index
    %c0_55 = arith.constant 0 : index
    %116 = vector.load %arg2[%c0_54, %c0_55] : memref<32x128xf32, #tpu.memory_space<vmem>>, vector<32x128xf32>
    %cst_56 = arith.constant dense<0.000000e+00> : vector<2x128xf32>
    %117 = tpu.matmul %104, %116, %cst_56 {dimension_numbers = #tpu.dot_dimension_numbers<[1], [0], [0], [1], [0, 0, 1, 1], [], []>} : vector<2x32xf32>, vector<32x128xf32>, vector<2x128xf32> -> vector<2x128xf32>
    %118 = arith.addf %115, %117 : vector<2x128xf32>
    %119 = arith.negf %114 : vector<2x128xf32>
    %120 = math.exp %119 : vector<2x128xf32>
    %cst_57 = arith.constant 1.000000e+00 : f32
    %121 = vector.broadcast %cst_57 : f32 to vector<2x128xf32>
    %122 = arith.addf %121, %120 : vector<2x128xf32>
    %123 = arith.divf %121, %122 : vector<2x128xf32>
    %124 = arith.negf %118 : vector<2x128xf32>
    %125 = math.exp %124 : vector<2x128xf32>
    %cst_58 = arith.constant 1.000000e+00 : f32
    %126 = vector.broadcast %cst_58 : f32 to vector<2x128xf32>
    %127 = arith.addf %126, %125 : vector<2x128xf32>
    %128 = arith.divf %126, %127 : vector<2x128xf32>
    %129 = vector.extract_strided_slice %114 {offsets = [0, 96], sizes = [2, 32], strides = [1, 1]} : vector<2x128xf32> to vector<2x32xf32>
    %130 = math.tanh %129 : vector<2x32xf32>
    %131 = vector.extract_strided_slice %118 {offsets = [0, 96], sizes = [2, 32], strides = [1, 1]} : vector<2x128xf32> to vector<2x32xf32>
    %132 = math.tanh %131 : vector<2x32xf32>
    %133 = vector.extract_strided_slice %123 {offsets = [0, 32], sizes = [2, 32], strides = [1, 1]} : vector<2x128xf32> to vector<2x32xf32>
    %134 = arith.mulf %133, %93 : vector<2x32xf32>
    %135 = vector.extract_strided_slice %123 {offsets = [0, 0], sizes = [2, 32], strides = [1, 1]} : vector<2x128xf32> to vector<2x32xf32>
    %136 = arith.mulf %135, %130 : vector<2x32xf32>
    %137 = arith.addf %134, %136 : vector<2x32xf32>
    %138 = vector.extract_strided_slice %128 {offsets = [0, 32], sizes = [2, 32], strides = [1, 1]} : vector<2x128xf32> to vector<2x32xf32>
    %139 = arith.mulf %138, %98 : vector<2x32xf32>
    %140 = vector.extract_strided_slice %128 {offsets = [0, 0], sizes = [2, 32], strides = [1, 1]} : vector<2x128xf32> to vector<2x32xf32>
    %141 = arith.mulf %140, %132 : vector<2x32xf32>
    %142 = arith.addf %139, %141 : vector<2x32xf32>
    %143 = vector.extract_strided_slice %123 {offsets = [0, 64], sizes = [2, 32], strides = [1, 1]} : vector<2x128xf32> to vector<2x32xf32>
    %144 = math.tanh %137 : vector<2x32xf32>
    %145 = arith.mulf %143, %144 : vector<2x32xf32>
    %146 = vector.extract_strided_slice %128 {offsets = [0, 64], sizes = [2, 32], strides = [1, 1]} : vector<2x128xf32> to vector<2x32xf32>
    %147 = math.tanh %142 : vector<2x32xf32>
    %148 = arith.mulf %146, %147 : vector<2x32xf32>
    %c2_59 = arith.constant 2 : index
    %c0_60 = arith.constant 0 : index
    %c0_61 = arith.constant 0 : index
    %149 = vector.load %arg12[%c2_59, %c0_60, %c0_61] : memref<8x2x32xf32, #tpu.memory_space<vmem>>, vector<1x2x32xf32>
    %150 = vector.shape_cast %149 : vector<1x2x32xf32> to vector<2x32xf32>
    %151 = vector.shape_cast %145 : vector<2x32xf32> to vector<1x2x32xf32>
    tpu.vector_store %arg12[%c2_59, %c0_60, %c0_61], %151 {strides = array<i32>} : memref<8x2x32xf32, #tpu.memory_space<vmem>>, vector<1x2x32xf32>,
    %c5 = arith.constant 5 : index
    %c0_62 = arith.constant 0 : index
    %c0_63 = arith.constant 0 : index
    %152 = vector.load %arg13[%c5, %c0_62, %c0_63] : memref<8x2x32xf32, #tpu.memory_space<vmem>>, vector<1x2x32xf32>
    %153 = vector.shape_cast %152 : vector<1x2x32xf32> to vector<2x32xf32>
    %154 = vector.shape_cast %148 : vector<2x32xf32> to vector<1x2x32xf32>
    tpu.vector_store %arg13[%c5, %c0_62, %c0_63], %154 {strides = array<i32>} : memref<8x2x32xf32, #tpu.memory_space<vmem>>, vector<1x2x32xf32>,
    %c6_64 = arith.constant 6 : index
    %c0_65 = arith.constant 0 : index
    %155 = vector.load %arg10[%c6_64, %c0_65] : memref<16x128xf32, #tpu.memory_space<vmem>>, vector<2x128xf32>
    %c0_66 = arith.constant 0 : index
    %c0_67 = arith.constant 0 : index
    %156 = vector.load %arg1[%c0_66, %c0_67] : memref<32x128xf32, #tpu.memory_space<vmem>>, vector<32x128xf32>
    %cst_68 = arith.constant dense<0.000000e+00> : vector<2x128xf32>
    %157 = tpu.matmul %145, %156, %cst_68 {dimension_numbers = #tpu.dot_dimension_numbers<[1], [0], [0], [1], [0, 0, 1, 1], [], []>} : vector<2x32xf32>, vector<32x128xf32>, vector<2x128xf32> -> vector<2x128xf32>
    %158 = arith.addf %155, %157 : vector<2x128xf32>
    %c6_69 = arith.constant 6 : index
    %c0_70 = arith.constant 0 : index
    %159 = vector.load %arg11[%c6_69, %c0_70] : memref<16x128xf32, #tpu.memory_space<vmem>>, vector<2x128xf32>
    %c0_71 = arith.constant 0 : index
    %c0_72 = arith.constant 0 : index
    %160 = vector.load %arg2[%c0_71, %c0_72] : memref<32x128xf32, #tpu.memory_space<vmem>>, vector<32x128xf32>
    %cst_73 = arith.constant dense<0.000000e+00> : vector<2x128xf32>
    %161 = tpu.matmul %148, %160, %cst_73 {dimension_numbers = #tpu.dot_dimension_numbers<[1], [0], [0], [1], [0, 0, 1, 1], [], []>} : vector<2x32xf32>, vector<32x128xf32>, vector<2x128xf32> -> vector<2x128xf32>
    %162 = arith.addf %159, %161 : vector<2x128xf32>
    %163 = arith.negf %158 : vector<2x128xf32>
    %164 = math.exp %163 : vector<2x128xf32>
    %cst_74 = arith.constant 1.000000e+00 : f32
    %165 = vector.broadcast %cst_74 : f32 to vector<2x128xf32>
    %166 = arith.addf %165, %164 : vector<2x128xf32>
    %167 = arith.divf %165, %166 : vector<2x128xf32>
    %168 = arith.negf %162 : vector<2x128xf32>
    %169 = math.exp %168 : vector<2x128xf32>
    %cst_75 = arith.constant 1.000000e+00 : f32
    %170 = vector.broadcast %cst_75 : f32 to vector<2x128xf32>
    %171 = arith.addf %170, %169 : vector<2x128xf32>
    %172 = arith.divf %170, %171 : vector<2x128xf32>
    %173 = vector.extract_strided_slice %158 {offsets = [0, 96], sizes = [2, 32], strides = [1, 1]} : vector<2x128xf32> to vector<2x32xf32>
    %174 = math.tanh %173 : vector<2x32xf32>
    %175 = vector.extract_strided_slice %162 {offsets = [0, 96], sizes = [2, 32], strides = [1, 1]} : vector<2x128xf32> to vector<2x32xf32>
    %176 = math.tanh %175 : vector<2x32xf32>
    %177 = vector.extract_strided_slice %167 {offsets = [0, 32], sizes = [2, 32], strides = [1, 1]} : vector<2x128xf32> to vector<2x32xf32>
    %178 = arith.mulf %177, %137 : vector<2x32xf32>
    %179 = vector.extract_strided_slice %167 {offsets = [0, 0], sizes = [2, 32], strides = [1, 1]} : vector<2x128xf32> to vector<2x32xf32>
    %180 = arith.mulf %179, %174 : vector<2x32xf32>
    %181 = arith.addf %178, %180 : vector<2x32xf32>
    %182 = vector.extract_strided_slice %172 {offsets = [0, 32], sizes = [2, 32], strides = [1, 1]} : vector<2x128xf32> to vector<2x32xf32>
    %183 = arith.mulf %182, %142 : vector<2x32xf32>
    %184 = vector.extract_strided_slice %172 {offsets = [0, 0], sizes = [2, 32], strides = [1, 1]} : vector<2x128xf32> to vector<2x32xf32>
    %185 = arith.mulf %184, %176 : vector<2x32xf32>
    %186 = arith.addf %183, %185 : vector<2x32xf32>
    %187 = vector.extract_strided_slice %167 {offsets = [0, 64], sizes = [2, 32], strides = [1, 1]} : vector<2x128xf32> to vector<2x32xf32>
    %188 = math.tanh %181 : vector<2x32xf32>
    %189 = arith.mulf %187, %188 : vector<2x32xf32>
    %190 = vector.extract_strided_slice %172 {offsets = [0, 64], sizes = [2, 32], strides = [1, 1]} : vector<2x128xf32> to vector<2x32xf32>
    %191 = math.tanh %186 : vector<2x32xf32>
    %192 = arith.mulf %190, %191 : vector<2x32xf32>
    %c3 = arith.constant 3 : index
    %c0_76 = arith.constant 0 : index
    %c0_77 = arith.constant 0 : index
    %193 = vector.load %arg12[%c3, %c0_76, %c0_77] : memref<8x2x32xf32, #tpu.memory_space<vmem>>, vector<1x2x32xf32>
    %194 = vector.shape_cast %193 : vector<1x2x32xf32> to vector<2x32xf32>
    %195 = vector.shape_cast %189 : vector<2x32xf32> to vector<1x2x32xf32>
    tpu.vector_store %arg12[%c3, %c0_76, %c0_77], %195 {strides = array<i32>} : memref<8x2x32xf32, #tpu.memory_space<vmem>>, vector<1x2x32xf32>,
    %c4_78 = arith.constant 4 : index
    %c0_79 = arith.constant 0 : index
    %c0_80 = arith.constant 0 : index
    %196 = vector.load %arg13[%c4_78, %c0_79, %c0_80] : memref<8x2x32xf32, #tpu.memory_space<vmem>>, vector<1x2x32xf32>
    %197 = vector.shape_cast %196 : vector<1x2x32xf32> to vector<2x32xf32>
    %198 = vector.shape_cast %192 : vector<2x32xf32> to vector<1x2x32xf32>
    tpu.vector_store %arg13[%c4_78, %c0_79, %c0_80], %198 {strides = array<i32>} : memref<8x2x32xf32, #tpu.memory_space<vmem>>, vector<1x2x32xf32>,
    %c8 = arith.constant 8 : index
    %c0_81 = arith.constant 0 : index
    %199 = vector.load %arg10[%c8, %c0_81] : memref<16x128xf32, #tpu.memory_space<vmem>>, vector<2x128xf32>
    %c0_82 = arith.constant 0 : index
    %c0_83 = arith.constant 0 : index
    %200 = vector.load %arg1[%c0_82, %c0_83] : memref<32x128xf32, #tpu.memory_space<vmem>>, vector<32x128xf32>
    %cst_84 = arith.constant dense<0.000000e+00> : vector<2x128xf32>
    %201 = tpu.matmul %189, %200, %cst_84 {dimension_numbers = #tpu.dot_dimension_numbers<[1], [0], [0], [1], [0, 0, 1, 1], [], []>} : vector<2x32xf32>, vector<32x128xf32>, vector<2x128xf32> -> vector<2x128xf32>
    %202 = arith.addf %199, %201 : vector<2x128xf32>
    %c8_85 = arith.constant 8 : index
    %c0_86 = arith.constant 0 : index
    %203 = vector.load %arg11[%c8_85, %c0_86] : memref<16x128xf32, #tpu.memory_space<vmem>>, vector<2x128xf32>
    %c0_87 = arith.constant 0 : index
    %c0_88 = arith.constant 0 : index
    %204 = vector.load %arg2[%c0_87, %c0_88] : memref<32x128xf32, #tpu.memory_space<vmem>>, vector<32x128xf32>
    %cst_89 = arith.constant dense<0.000000e+00> : vector<2x128xf32>
    %205 = tpu.matmul %192, %204, %cst_89 {dimension_numbers = #tpu.dot_dimension_numbers<[1], [0], [0], [1], [0, 0, 1, 1], [], []>} : vector<2x32xf32>, vector<32x128xf32>, vector<2x128xf32> -> vector<2x128xf32>
    %206 = arith.addf %203, %205 : vector<2x128xf32>
    %207 = arith.negf %202 : vector<2x128xf32>
    %208 = math.exp %207 : vector<2x128xf32>
    %cst_90 = arith.constant 1.000000e+00 : f32
    %209 = vector.broadcast %cst_90 : f32 to vector<2x128xf32>
    %210 = arith.addf %209, %208 : vector<2x128xf32>
    %211 = arith.divf %209, %210 : vector<2x128xf32>
    %212 = arith.negf %206 : vector<2x128xf32>
    %213 = math.exp %212 : vector<2x128xf32>
    %cst_91 = arith.constant 1.000000e+00 : f32
    %214 = vector.broadcast %cst_91 : f32 to vector<2x128xf32>
    %215 = arith.addf %214, %213 : vector<2x128xf32>
    %216 = arith.divf %214, %215 : vector<2x128xf32>
    %217 = vector.extract_strided_slice %202 {offsets = [0, 96], sizes = [2, 32], strides = [1, 1]} : vector<2x128xf32> to vector<2x32xf32>
    %218 = math.tanh %217 : vector<2x32xf32>
    %219 = vector.extract_strided_slice %206 {offsets = [0, 96], sizes = [2, 32], strides = [1, 1]} : vector<2x128xf32> to vector<2x32xf32>
    %220 = math.tanh %219 : vector<2x32xf32>
    %221 = vector.extract_strided_slice %211 {offsets = [0, 32], sizes = [2, 32], strides = [1, 1]} : vector<2x128xf32> to vector<2x32xf32>
    %222 = arith.mulf %221, %181 : vector<2x32xf32>
    %223 = vector.extract_strided_slice %211 {offsets = [0, 0], sizes = [2, 32], strides = [1, 1]} : vector<2x128xf32> to vector<2x32xf32>
    %224 = arith.mulf %223, %218 : vector<2x32xf32>
    %225 = arith.addf %222, %224 : vector<2x32xf32>
    %226 = vector.extract_strided_slice %216 {offsets = [0, 32], sizes = [2, 32], strides = [1, 1]} : vector<2x128xf32> to vector<2x32xf32>
    %227 = arith.mulf %226, %186 : vector<2x32xf32>
    %228 = vector.extract_strided_slice %216 {offsets = [0, 0], sizes = [2, 32], strides = [1, 1]} : vector<2x128xf32> to vector<2x32xf32>
    %229 = arith.mulf %228, %220 : vector<2x32xf32>
    %230 = arith.addf %227, %229 : vector<2x32xf32>
    %231 = vector.extract_strided_slice %211 {offsets = [0, 64], sizes = [2, 32], strides = [1, 1]} : vector<2x128xf32> to vector<2x32xf32>
    %232 = math.tanh %225 : vector<2x32xf32>
    %233 = arith.mulf %231, %232 : vector<2x32xf32>
    %234 = vector.extract_strided_slice %216 {offsets = [0, 64], sizes = [2, 32], strides = [1, 1]} : vector<2x128xf32> to vector<2x32xf32>
    %235 = math.tanh %230 : vector<2x32xf32>
    %236 = arith.mulf %234, %235 : vector<2x32xf32>
    %c4_92 = arith.constant 4 : index
    %c0_93 = arith.constant 0 : index
    %c0_94 = arith.constant 0 : index
    %237 = vector.load %arg12[%c4_92, %c0_93, %c0_94] : memref<8x2x32xf32, #tpu.memory_space<vmem>>, vector<1x2x32xf32>
    %238 = vector.shape_cast %237 : vector<1x2x32xf32> to vector<2x32xf32>
    %239 = vector.shape_cast %233 : vector<2x32xf32> to vector<1x2x32xf32>
    tpu.vector_store %arg12[%c4_92, %c0_93, %c0_94], %239 {strides = array<i32>} : memref<8x2x32xf32, #tpu.memory_space<vmem>>, vector<1x2x32xf32>,
    %c3_95 = arith.constant 3 : index
    %c0_96 = arith.constant 0 : index
    %c0_97 = arith.constant 0 : index
    %240 = vector.load %arg13[%c3_95, %c0_96, %c0_97] : memref<8x2x32xf32, #tpu.memory_space<vmem>>, vector<1x2x32xf32>
    %241 = vector.shape_cast %240 : vector<1x2x32xf32> to vector<2x32xf32>
    %242 = vector.shape_cast %236 : vector<2x32xf32> to vector<1x2x32xf32>
    tpu.vector_store %arg13[%c3_95, %c0_96, %c0_97], %242 {strides = array<i32>} : memref<8x2x32xf32, #tpu.memory_space<vmem>>, vector<1x2x32xf32>,
    %c10 = arith.constant 10 : index
    %c0_98 = arith.constant 0 : index
    %243 = vector.load %arg10[%c10, %c0_98] : memref<16x128xf32, #tpu.memory_space<vmem>>, vector<2x128xf32>
    %c0_99 = arith.constant 0 : index
    %c0_100 = arith.constant 0 : index
    %244 = vector.load %arg1[%c0_99, %c0_100] : memref<32x128xf32, #tpu.memory_space<vmem>>, vector<32x128xf32>
    %cst_101 = arith.constant dense<0.000000e+00> : vector<2x128xf32>
    %245 = tpu.matmul %233, %244, %cst_101 {dimension_numbers = #tpu.dot_dimension_numbers<[1], [0], [0], [1], [0, 0, 1, 1], [], []>} : vector<2x32xf32>, vector<32x128xf32>, vector<2x128xf32> -> vector<2x128xf32>
    %246 = arith.addf %243, %245 : vector<2x128xf32>
    %c10_102 = arith.constant 10 : index
    %c0_103 = arith.constant 0 : index
    %247 = vector.load %arg11[%c10_102, %c0_103] : memref<16x128xf32, #tpu.memory_space<vmem>>, vector<2x128xf32>
    %c0_104 = arith.constant 0 : index
    %c0_105 = arith.constant 0 : index
    %248 = vector.load %arg2[%c0_104, %c0_105] : memref<32x128xf32, #tpu.memory_space<vmem>>, vector<32x128xf32>
    %cst_106 = arith.constant dense<0.000000e+00> : vector<2x128xf32>
    %249 = tpu.matmul %236, %248, %cst_106 {dimension_numbers = #tpu.dot_dimension_numbers<[1], [0], [0], [1], [0, 0, 1, 1], [], []>} : vector<2x32xf32>, vector<32x128xf32>, vector<2x128xf32> -> vector<2x128xf32>
    %250 = arith.addf %247, %249 : vector<2x128xf32>
    %251 = arith.negf %246 : vector<2x128xf32>
    %252 = math.exp %251 : vector<2x128xf32>
    %cst_107 = arith.constant 1.000000e+00 : f32
    %253 = vector.broadcast %cst_107 : f32 to vector<2x128xf32>
    %254 = arith.addf %253, %252 : vector<2x128xf32>
    %255 = arith.divf %253, %254 : vector<2x128xf32>
    %256 = arith.negf %250 : vector<2x128xf32>
    %257 = math.exp %256 : vector<2x128xf32>
    %cst_108 = arith.constant 1.000000e+00 : f32
    %258 = vector.broadcast %cst_108 : f32 to vector<2x128xf32>
    %259 = arith.addf %258, %257 : vector<2x128xf32>
    %260 = arith.divf %258, %259 : vector<2x128xf32>
    %261 = vector.extract_strided_slice %246 {offsets = [0, 96], sizes = [2, 32], strides = [1, 1]} : vector<2x128xf32> to vector<2x32xf32>
    %262 = math.tanh %261 : vector<2x32xf32>
    %263 = vector.extract_strided_slice %250 {offsets = [0, 96], sizes = [2, 32], strides = [1, 1]} : vector<2x128xf32> to vector<2x32xf32>
    %264 = math.tanh %263 : vector<2x32xf32>
    %265 = vector.extract_strided_slice %255 {offsets = [0, 32], sizes = [2, 32], strides = [1, 1]} : vector<2x128xf32> to vector<2x32xf32>
    %266 = arith.mulf %265, %225 : vector<2x32xf32>
    %267 = vector.extract_strided_slice %255 {offsets = [0, 0], sizes = [2, 32], strides = [1, 1]} : vector<2x128xf32> to vector<2x32xf32>
    %268 = arith.mulf %267, %262 : vector<2x32xf32>
    %269 = arith.addf %266, %268 : vector<2x32xf32>
    %270 = vector.extract_strided_slice %260 {offsets = [0, 32], sizes = [2, 32], strides = [1, 1]} : vector<2x128xf32> to vector<2x32xf32>
    %271 = arith.mulf %270, %230 : vector<2x32xf32>
    %272 = vector.extract_strided_slice %260 {offsets = [0, 0], sizes = [2, 32], strides = [1, 1]} : vector<2x128xf32> to vector<2x32xf32>
    %273 = arith.mulf %272, %264 : vector<2x32xf32>
    %274 = arith.addf %271, %273 : vector<2x32xf32>
    %275 = vector.extract_strided_slice %255 {offsets = [0, 64], sizes = [2, 32], strides = [1, 1]} : vector<2x128xf32> to vector<2x32xf32>
    %276 = math.tanh %269 : vector<2x32xf32>
    %277 = arith.mulf %275, %276 : vector<2x32xf32>
    %278 = vector.extract_strided_slice %260 {offsets = [0, 64], sizes = [2, 32], strides = [1, 1]} : vector<2x128xf32> to vector<2x32xf32>
    %279 = math.tanh %274 : vector<2x32xf32>
    %280 = arith.mulf %278, %279 : vector<2x32xf32>
    %c5_109 = arith.constant 5 : index
    %c0_110 = arith.constant 0 : index
    %c0_111 = arith.constant 0 : index
    %281 = vector.load %arg12[%c5_109, %c0_110, %c0_111] : memref<8x2x32xf32, #tpu.memory_space<vmem>>, vector<1x2x32xf32>
    %282 = vector.shape_cast %281 : vector<1x2x32xf32> to vector<2x32xf32>
    %283 = vector.shape_cast %277 : vector<2x32xf32> to vector<1x2x32xf32>
    tpu.vector_store %arg12[%c5_109, %c0_110, %c0_111], %283 {strides = array<i32>} : memref<8x2x32xf32, #tpu.memory_space<vmem>>, vector<1x2x32xf32>,
    %c2_112 = arith.constant 2 : index
    %c0_113 = arith.constant 0 : index
    %c0_114 = arith.constant 0 : index
    %284 = vector.load %arg13[%c2_112, %c0_113, %c0_114] : memref<8x2x32xf32, #tpu.memory_space<vmem>>, vector<1x2x32xf32>
    %285 = vector.shape_cast %284 : vector<1x2x32xf32> to vector<2x32xf32>
    %286 = vector.shape_cast %280 : vector<2x32xf32> to vector<1x2x32xf32>
    tpu.vector_store %arg13[%c2_112, %c0_113, %c0_114], %286 {strides = array<i32>} : memref<8x2x32xf32, #tpu.memory_space<vmem>>, vector<1x2x32xf32>,
    %c12 = arith.constant 12 : index
    %c0_115 = arith.constant 0 : index
    %287 = vector.load %arg10[%c12, %c0_115] : memref<16x128xf32, #tpu.memory_space<vmem>>, vector<2x128xf32>
    %c0_116 = arith.constant 0 : index
    %c0_117 = arith.constant 0 : index
    %288 = vector.load %arg1[%c0_116, %c0_117] : memref<32x128xf32, #tpu.memory_space<vmem>>, vector<32x128xf32>
    %cst_118 = arith.constant dense<0.000000e+00> : vector<2x128xf32>
    %289 = tpu.matmul %277, %288, %cst_118 {dimension_numbers = #tpu.dot_dimension_numbers<[1], [0], [0], [1], [0, 0, 1, 1], [], []>} : vector<2x32xf32>, vector<32x128xf32>, vector<2x128xf32> -> vector<2x128xf32>
    %290 = arith.addf %287, %289 : vector<2x128xf32>
    %c12_119 = arith.constant 12 : index
    %c0_120 = arith.constant 0 : index
    %291 = vector.load %arg11[%c12_119, %c0_120] : memref<16x128xf32, #tpu.memory_space<vmem>>, vector<2x128xf32>
    %c0_121 = arith.constant 0 : index
    %c0_122 = arith.constant 0 : index
    %292 = vector.load %arg2[%c0_121, %c0_122] : memref<32x128xf32, #tpu.memory_space<vmem>>, vector<32x128xf32>
    %cst_123 = arith.constant dense<0.000000e+00> : vector<2x128xf32>
    %293 = tpu.matmul %280, %292, %cst_123 {dimension_numbers = #tpu.dot_dimension_numbers<[1], [0], [0], [1], [0, 0, 1, 1], [], []>} : vector<2x32xf32>, vector<32x128xf32>, vector<2x128xf32> -> vector<2x128xf32>
    %294 = arith.addf %291, %293 : vector<2x128xf32>
    %295 = arith.negf %290 : vector<2x128xf32>
    %296 = math.exp %295 : vector<2x128xf32>
    %cst_124 = arith.constant 1.000000e+00 : f32
    %297 = vector.broadcast %cst_124 : f32 to vector<2x128xf32>
    %298 = arith.addf %297, %296 : vector<2x128xf32>
    %299 = arith.divf %297, %298 : vector<2x128xf32>
    %300 = arith.negf %294 : vector<2x128xf32>
    %301 = math.exp %300 : vector<2x128xf32>
    %cst_125 = arith.constant 1.000000e+00 : f32
    %302 = vector.broadcast %cst_125 : f32 to vector<2x128xf32>
    %303 = arith.addf %302, %301 : vector<2x128xf32>
    %304 = arith.divf %302, %303 : vector<2x128xf32>
    %305 = vector.extract_strided_slice %290 {offsets = [0, 96], sizes = [2, 32], strides = [1, 1]} : vector<2x128xf32> to vector<2x32xf32>
    %306 = math.tanh %305 : vector<2x32xf32>
    %307 = vector.extract_strided_slice %294 {offsets = [0, 96], sizes = [2, 32], strides = [1, 1]} : vector<2x128xf32> to vector<2x32xf32>
    %308 = math.tanh %307 : vector<2x32xf32>
    %309 = vector.extract_strided_slice %299 {offsets = [0, 32], sizes = [2, 32], strides = [1, 1]} : vector<2x128xf32> to vector<2x32xf32>
    %310 = arith.mulf %309, %269 : vector<2x32xf32>
    %311 = vector.extract_strided_slice %299 {offsets = [0, 0], sizes = [2, 32], strides = [1, 1]} : vector<2x128xf32> to vector<2x32xf32>
    %312 = arith.mulf %311, %306 : vector<2x32xf32>
    %313 = arith.addf %310, %312 : vector<2x32xf32>
    %314 = vector.extract_strided_slice %304 {offsets = [0, 32], sizes = [2, 32], strides = [1, 1]} : vector<2x128xf32> to vector<2x32xf32>
    %315 = arith.mulf %314, %274 : vector<2x32xf32>
    %316 = vector.extract_strided_slice %304 {offsets = [0, 0], sizes = [2, 32], strides = [1, 1]} : vector<2x128xf32> to vector<2x32xf32>
    %317 = arith.mulf %316, %308 : vector<2x32xf32>
    %318 = arith.addf %315, %317 : vector<2x32xf32>
    %319 = vector.extract_strided_slice %299 {offsets = [0, 64], sizes = [2, 32], strides = [1, 1]} : vector<2x128xf32> to vector<2x32xf32>
    %320 = math.tanh %313 : vector<2x32xf32>
    %321 = arith.mulf %319, %320 : vector<2x32xf32>
    %322 = vector.extract_strided_slice %304 {offsets = [0, 64], sizes = [2, 32], strides = [1, 1]} : vector<2x128xf32> to vector<2x32xf32>
    %323 = math.tanh %318 : vector<2x32xf32>
    %324 = arith.mulf %322, %323 : vector<2x32xf32>
    %c6_126 = arith.constant 6 : index
    %c0_127 = arith.constant 0 : index
    %c0_128 = arith.constant 0 : index
    %325 = vector.load %arg12[%c6_126, %c0_127, %c0_128] : memref<8x2x32xf32, #tpu.memory_space<vmem>>, vector<1x2x32xf32>
    %326 = vector.shape_cast %325 : vector<1x2x32xf32> to vector<2x32xf32>
    %327 = vector.shape_cast %321 : vector<2x32xf32> to vector<1x2x32xf32>
    tpu.vector_store %arg12[%c6_126, %c0_127, %c0_128], %327 {strides = array<i32>} : memref<8x2x32xf32, #tpu.memory_space<vmem>>, vector<1x2x32xf32>,
    %c1_129 = arith.constant 1 : index
    %c0_130 = arith.constant 0 : index
    %c0_131 = arith.constant 0 : index
    %328 = vector.load %arg13[%c1_129, %c0_130, %c0_131] : memref<8x2x32xf32, #tpu.memory_space<vmem>>, vector<1x2x32xf32>
    %329 = vector.shape_cast %328 : vector<1x2x32xf32> to vector<2x32xf32>
    %330 = vector.shape_cast %324 : vector<2x32xf32> to vector<1x2x32xf32>
    tpu.vector_store %arg13[%c1_129, %c0_130, %c0_131], %330 {strides = array<i32>} : memref<8x2x32xf32, #tpu.memory_space<vmem>>, vector<1x2x32xf32>,
    %c14 = arith.constant 14 : index
    %c0_132 = arith.constant 0 : index
    %331 = vector.load %arg10[%c14, %c0_132] : memref<16x128xf32, #tpu.memory_space<vmem>>, vector<2x128xf32>
    %c0_133 = arith.constant 0 : index
    %c0_134 = arith.constant 0 : index
    %332 = vector.load %arg1[%c0_133, %c0_134] : memref<32x128xf32, #tpu.memory_space<vmem>>, vector<32x128xf32>
    %cst_135 = arith.constant dense<0.000000e+00> : vector<2x128xf32>
    %333 = tpu.matmul %321, %332, %cst_135 {dimension_numbers = #tpu.dot_dimension_numbers<[1], [0], [0], [1], [0, 0, 1, 1], [], []>} : vector<2x32xf32>, vector<32x128xf32>, vector<2x128xf32> -> vector<2x128xf32>
    %334 = arith.addf %331, %333 : vector<2x128xf32>
    %c14_136 = arith.constant 14 : index
    %c0_137 = arith.constant 0 : index
    %335 = vector.load %arg11[%c14_136, %c0_137] : memref<16x128xf32, #tpu.memory_space<vmem>>, vector<2x128xf32>
    %c0_138 = arith.constant 0 : index
    %c0_139 = arith.constant 0 : index
    %336 = vector.load %arg2[%c0_138, %c0_139] : memref<32x128xf32, #tpu.memory_space<vmem>>, vector<32x128xf32>
    %cst_140 = arith.constant dense<0.000000e+00> : vector<2x128xf32>
    %337 = tpu.matmul %324, %336, %cst_140 {dimension_numbers = #tpu.dot_dimension_numbers<[1], [0], [0], [1], [0, 0, 1, 1], [], []>} : vector<2x32xf32>, vector<32x128xf32>, vector<2x128xf32> -> vector<2x128xf32>
    %338 = arith.addf %335, %337 : vector<2x128xf32>
    %339 = arith.negf %334 : vector<2x128xf32>
    %340 = math.exp %339 : vector<2x128xf32>
    %cst_141 = arith.constant 1.000000e+00 : f32
    %341 = vector.broadcast %cst_141 : f32 to vector<2x128xf32>
    %342 = arith.addf %341, %340 : vector<2x128xf32>
    %343 = arith.divf %341, %342 : vector<2x128xf32>
    %344 = arith.negf %338 : vector<2x128xf32>
    %345 = math.exp %344 : vector<2x128xf32>
    %cst_142 = arith.constant 1.000000e+00 : f32
    %346 = vector.broadcast %cst_142 : f32 to vector<2x128xf32>
    %347 = arith.addf %346, %345 : vector<2x128xf32>
    %348 = arith.divf %346, %347 : vector<2x128xf32>
    %349 = vector.extract_strided_slice %334 {offsets = [0, 96], sizes = [2, 32], strides = [1, 1]} : vector<2x128xf32> to vector<2x32xf32>
    %350 = math.tanh %349 : vector<2x32xf32>
    %351 = vector.extract_strided_slice %338 {offsets = [0, 96], sizes = [2, 32], strides = [1, 1]} : vector<2x128xf32> to vector<2x32xf32>
    %352 = math.tanh %351 : vector<2x32xf32>
    %353 = vector.extract_strided_slice %343 {offsets = [0, 32], sizes = [2, 32], strides = [1, 1]} : vector<2x128xf32> to vector<2x32xf32>
    %354 = arith.mulf %353, %313 : vector<2x32xf32>
    %355 = vector.extract_strided_slice %343 {offsets = [0, 0], sizes = [2, 32], strides = [1, 1]} : vector<2x128xf32> to vector<2x32xf32>
    %356 = arith.mulf %355, %350 : vector<2x32xf32>
    %357 = arith.addf %354, %356 : vector<2x32xf32>
    %358 = vector.extract_strided_slice %348 {offsets = [0, 32], sizes = [2, 32], strides = [1, 1]} : vector<2x128xf32> to vector<2x32xf32>
    %359 = arith.mulf %358, %318 : vector<2x32xf32>
    %360 = vector.extract_strided_slice %348 {offsets = [0, 0], sizes = [2, 32], strides = [1, 1]} : vector<2x128xf32> to vector<2x32xf32>
    %361 = arith.mulf %360, %352 : vector<2x32xf32>
    %362 = arith.addf %359, %361 : vector<2x32xf32>
    %363 = vector.extract_strided_slice %343 {offsets = [0, 64], sizes = [2, 32], strides = [1, 1]} : vector<2x128xf32> to vector<2x32xf32>
    %364 = math.tanh %357 : vector<2x32xf32>
    %365 = arith.mulf %363, %364 : vector<2x32xf32>
    %366 = vector.extract_strided_slice %348 {offsets = [0, 64], sizes = [2, 32], strides = [1, 1]} : vector<2x128xf32> to vector<2x32xf32>
    %367 = math.tanh %362 : vector<2x32xf32>
    %368 = arith.mulf %366, %367 : vector<2x32xf32>
    %c7_143 = arith.constant 7 : index
    %c0_144 = arith.constant 0 : index
    %c0_145 = arith.constant 0 : index
    %369 = vector.load %arg12[%c7_143, %c0_144, %c0_145] : memref<8x2x32xf32, #tpu.memory_space<vmem>>, vector<1x2x32xf32>
    %370 = vector.shape_cast %369 : vector<1x2x32xf32> to vector<2x32xf32>
    %371 = vector.shape_cast %365 : vector<2x32xf32> to vector<1x2x32xf32>
    tpu.vector_store %arg12[%c7_143, %c0_144, %c0_145], %371 {strides = array<i32>} : memref<8x2x32xf32, #tpu.memory_space<vmem>>, vector<1x2x32xf32>,
    %c0_146 = arith.constant 0 : index
    %c0_147 = arith.constant 0 : index
    %c0_148 = arith.constant 0 : index
    %372 = vector.load %arg13[%c0_146, %c0_147, %c0_148] : memref<8x2x32xf32, #tpu.memory_space<vmem>>, vector<1x2x32xf32>
    %373 = vector.shape_cast %372 : vector<1x2x32xf32> to vector<2x32xf32>
    %374 = vector.shape_cast %368 : vector<2x32xf32> to vector<1x2x32xf32>
    tpu.vector_store %arg13[%c0_146, %c0_147, %c0_148], %374 {strides = array<i32>} : memref<8x2x32xf32, #tpu.memory_space<vmem>>, vector<1x2x32xf32>,
    %c0_149 = arith.constant 0 : index
    %c0_150 = arith.constant 0 : index
    %c0_151 = arith.constant 0 : index
    %375 = vector.load %arg12[%c0_149, %c0_150, %c0_151] : memref<8x2x32xf32, #tpu.memory_space<vmem>>, vector<8x2x32xf32>
    %c0_152 = arith.constant 0 : index
    %c0_153 = arith.constant 0 : index
    %c0_154 = arith.constant 0 : index
    %376 = vector.load %arg13[%c0_152, %c0_153, %c0_154] : memref<8x2x32xf32, #tpu.memory_space<vmem>>, vector<8x2x32xf32>
    %c0_155 = arith.constant 0 : index
    %c0_156 = arith.constant 0 : index
    %377 = vector.load %arg7[%c0_155, %c0_156] : memref<1x32xf32, #tpu.memory_space<vmem>>, vector<1x32xf32>
    %378 = vector.shape_cast %377 : vector<1x32xf32> to vector<1x1x32xf32>
    %379 = vector.broadcast %378 : vector<1x1x32xf32> to vector<8x2x32xf32>
    %380 = arith.mulf %375, %379 : vector<8x2x32xf32>
    %cst_157 = arith.constant dense<0.000000e+00> : vector<8x2xf32>
    %381 = vector.multi_reduction <add>, %380, %cst_157 [2] : vector<8x2x32xf32> to vector<8x2xf32>
    %382 = vector.shape_cast %381 : vector<8x2xf32> to vector<8x2x1xf32>
    %c0_158 = arith.constant 0 : index
    %c0_159 = arith.constant 0 : index
    %383 = vector.load %arg8[%c0_158, %c0_159] : memref<1x32xf32, #tpu.memory_space<vmem>>, vector<1x32xf32>
    %384 = vector.shape_cast %383 : vector<1x32xf32> to vector<1x1x32xf32>
    %385 = vector.broadcast %384 : vector<1x1x32xf32> to vector<8x2x32xf32>
    %386 = arith.mulf %376, %385 : vector<8x2x32xf32>
    %cst_160 = arith.constant dense<0.000000e+00> : vector<8x2xf32>
    %387 = vector.multi_reduction <add>, %386, %cst_160 [2] : vector<8x2x32xf32> to vector<8x2xf32>
    %388 = vector.shape_cast %387 : vector<8x2xf32> to vector<8x2x1xf32>
    %389 = arith.addf %382, %388 : vector<8x2x1xf32>
    %390 = math.tanh %389 : vector<8x2x1xf32>
    %cst_161 = arith.constant dense<0xFF800000> : vector<8x1xf32>
    %391 = vector.multi_reduction <maximumf>, %390, %cst_161 [1] : vector<8x2x1xf32> to vector<8x1xf32>
    %392 = vector.shape_cast %391 : vector<8x1xf32> to vector<8x1x1xf32>
    %393 = vector.broadcast %392 : vector<8x1x1xf32> to vector<8x2x1xf32>
    %394 = arith.subf %390, %393 : vector<8x2x1xf32>
    %395 = math.exp %394 : vector<8x2x1xf32>
    %cst_162 = arith.constant dense<0.000000e+00> : vector<8x1xf32>
    %396 = vector.multi_reduction <add>, %395, %cst_162 [1] : vector<8x2x1xf32> to vector<8x1xf32>
    %397 = vector.shape_cast %396 : vector<8x1xf32> to vector<8x1x1xf32>
    %398 = tpu.reciprocal %397 {approx = true} : vector<8x1x1xf32> -> vector<8x1x1xf32>
    %399 = vector.broadcast %398 : vector<8x1x1xf32> to vector<8x2x1xf32>
    %400 = arith.mulf %395, %399 : vector<8x2x1xf32>
    %401 = vector.broadcast %400 : vector<8x2x1xf32> to vector<8x2x32xf32>
    %402 = arith.mulf %401, %375 : vector<8x2x32xf32>
    %cst_163 = arith.constant dense<0.000000e+00> : vector<8x32xf32>
    %403 = vector.multi_reduction <add>, %402, %cst_163 [1] : vector<8x2x32xf32> to vector<8x32xf32>
    %c0_164 = arith.constant 0 : index
    %c0_165 = arith.constant 0 : index
    %404 = vector.load %arg9[%c0_164, %c0_165] : memref<8x64xf32, #tpu.memory_space<vmem>>, vector<8x32xf32>
    tpu.vector_store %arg9[%c0_164, %c0_165], %403 {strides = array<i32>} : memref<8x64xf32, #tpu.memory_space<vmem>>, vector<8x32xf32>,
    %405 = vector.broadcast %400 : vector<8x2x1xf32> to vector<8x2x32xf32>
    %406 = arith.mulf %405, %376 : vector<8x2x32xf32>
    %cst_166 = arith.constant dense<0.000000e+00> : vector<8x32xf32>
    %407 = vector.multi_reduction <add>, %406, %cst_166 [1] : vector<8x2x32xf32> to vector<8x32xf32>
    %c0_167 = arith.constant 0 : index
    %c32 = arith.constant 32 : index
    %408 = vector.load %arg9[%c0_167, %c32] : memref<8x64xf32, #tpu.memory_space<vmem>>, vector<8x32xf32>
    tpu.vector_store %arg9[%c0_167, %c32], %407 {strides = array<i32>} : memref<8x64xf32, #tpu.memory_space<vmem>>, vector<8x32xf32>,
    return
  }
}

</mosaic_0001>

<llo_original>
// kernel: tpu_custom_call.1
$region0: #{tpu_custom_call.1}
  #allocation0 [shape = 'u32[]', space=smem, size = 0x4, offset = 0x4, fixed_abs, tag = 'smem constant byte address 0x4 - core index']
  #allocation1 [shape = 'u32[72,128]{1,0:T(1,128)}', space=vmem, size = 0x9000, scoped, tag = 'internal scratch']
  #allocation2 [shape = 'f32[16,128]{1,0:T(8,128)}', space=vmem, size = 0x2000, scoped, tag = 'scratch operand']
  #allocation3 [shape = 'f32[16,128]{1,0:T(8,128)}', space=vmem, size = 0x2000, scoped, tag = 'scratch operand']
  #allocation4 [shape = 'f32[8,2,32]{2,1,0:T(2,128)}', space=vmem, size = 0x2000, scoped, tag = 'scratch operand']
  #allocation5 [shape = 'f32[8,2,32]{2,1,0:T(2,128)}', space=vmem, size = 0x2000, scoped, tag = 'scratch operand']
  %s0 = inlined_call_operand.vmem [shape: f32[16,2], index: 0, kind: input, shape index: {}]
  %s1 = inlined_call_operand.hbm [shape: f32[32,128], index: 1, kind: input, shape index: {}]
  %s2 = inlined_call_operand.hbm [shape: f32[32,128], index: 2, kind: input, shape index: {}]
  %s3 = inlined_call_operand.vmem [shape: f32[1,128], index: 3, kind: input, shape index: {}]
  %s4 = inlined_call_operand.vmem [shape: f32[1,128], index: 4, kind: input, shape index: {}]
  %s5 = inlined_call_operand.vmem [shape: f32[1,128], index: 5, kind: input, shape index: {}]
  %s6 = inlined_call_operand.vmem [shape: f32[1,128], index: 6, kind: input, shape index: {}]
  %s7 = inlined_call_operand.vmem [shape: f32[1,32], index: 7, kind: input, shape index: {}]
  %s8 = inlined_call_operand.vmem [shape: f32[1,32], index: 8, kind: input, shape index: {}]
  %s9 = inlined_call_operand.hbm [shape: f32[8,64], index: 9, kind: output, shape index: {}]
  %s10 = sld [smem:[#allocation0]]
  $region54: #{tpu_custom_call.1} parent=0
    _
  %s12 = ssub.s32 1, %s10
  %s13 = scalar_select 0, %s12, %s10
  $region1: #{tpu_custom_call.1} parent=0
    #allocation6 [shape = 'u8[16384]{0}', space=vmem, size = 0x4000, scoped, tag = 'input window, operand 1, single buffered']
    #allocation7 [shape = 's32[1]{0}', space=sflag, size = 0x4, scoped, tag = 'scoped memory for tpu_custom_call.1']
    #allocation8 [shape = 's32[1]{0}', space=sflag, size = 0x4, scoped, tag = 'scoped memory for tpu_custom_call.1']
    #allocation9 [shape = 'u8[16384]{0}', space=vmem, size = 0x4000, scoped, tag = 'input window, operand 2, single buffered']
    #allocation10 [shape = 's32[1]{0}', space=sflag, size = 0x4, scoped, tag = 'scoped memory for tpu_custom_call.1']
    #allocation11 [shape = 'u8[4096]{0}', space=vmem, size = 0x1000, scoped, tag = 'output window, operand 0, single buffered']
    %14 = vsyncpa [#allocation7], 0
    %15 = vsyncpa [#allocation10], 0
    %16 = vsyncpa [#allocation8], 0
    // Predicated region
    $region2: #{tpu_custom_call.1} parent=1 // pred_check
      _
    $region3: #{tpu_custom_call.1} parent=1 // pred_check_branch
      %18 = sbr.rel (0) target = $region5
    $region4: #{tpu_custom_call.1} parent=1 // pred_region
      _
    $region5: #{tpu_custom_call.1} parent=1 // pred_fallthru
      _
    // Predicated region
    $region6: #{tpu_custom_call.1} parent=1 // pred_check
      _
    $region7: #{tpu_custom_call.1} parent=1 // pred_check_branch
      %20 = sbr.rel (0) target = $region9
    $region8: #{tpu_custom_call.1} parent=1 // pred_region
      %22 = vsyncadd [#allocation7], 0
      %s23 = sshll.u32 %s1, 4
      %s24 = int_to_ptr.hbm [resolvable:$true] %s23
      %s25 = sshll.u32 [#allocation6], 4
      %s26 = int_to_ptr.vmem [resolvable:$true] %s25
      %31 = dma.hbm_to_vmem [thread:$0]  %s24, 512, %s26, [#allocation7], 128, 128, 8
    $region9: #{tpu_custom_call.1} parent=1 // pred_fallthru
      _
    // Predicated region
    $region10: #{tpu_custom_call.1} parent=1 // pred_check
      _
    $region11: #{tpu_custom_call.1} parent=1 // pred_check_branch
      %33 = sbr.rel (0) target = $region13
    $region12: #{tpu_custom_call.1} parent=1 // pred_region
      %35 = vsyncadd [#allocation10], 0
      %s36 = sshll.u32 %s2, 4
      %s37 = int_to_ptr.hbm [resolvable:$true] %s36
      %s38 = sshll.u32 [#allocation9], 4
      %s39 = int_to_ptr.vmem [resolvable:$true] %s38
      %44 = dma.hbm_to_vmem [thread:$0]  %s37, 512, %s39, [#allocation10], 128, 128, 8
    $region13: #{tpu_custom_call.1} parent=1 // pred_fallthru
      _
    // Predicated region
    $region14: #{tpu_custom_call.1} parent=1 // pred_check
      _
    $region15: #{tpu_custom_call.1} parent=1 // pred_check_branch
      %46 = sbr.rel (0) target = $region17
    $region16: #{tpu_custom_call.1} parent=1 // pred_region
      _
    $region17: #{tpu_custom_call.1} parent=1 // pred_fallthru
      _
    // Predicated region
    $region18: #{tpu_custom_call.1} parent=1 // pred_check
      _
    $region19: #{tpu_custom_call.1} parent=1 // pred_check_branch
      %48 = sbr.rel (0) target = $region21
    $region20: #{tpu_custom_call.1} parent=1 // pred_region
      _
    $region21: #{tpu_custom_call.1} parent=1 // pred_fallthru
      _
    // Predicated region
    $region22: #{tpu_custom_call.1} parent=1 // pred_check
      _
    $region23: #{tpu_custom_call.1} parent=1 // pred_check_branch
      %50 = sbr.rel (0) target = $region25
    $region24: #{tpu_custom_call.1} parent=1 // pred_region
      _
    $region25: #{tpu_custom_call.1} parent=1 // pred_fallthru
      _
    // Predicated region
    $region26: #{tpu_custom_call.1} parent=1 // pred_check
      _
    $region27: #{tpu_custom_call.1} parent=1 // pred_check_branch
      %52 = sbr.rel (0) target = $region29
    $region28: #{tpu_custom_call.1} parent=1 // pred_region
      _
    $region29: #{tpu_custom_call.1} parent=1 // pred_fallthru
      _
    // Predicated region
    $region30: #{tpu_custom_call.1} parent=1 // pred_check
      _
    $region31: #{tpu_custom_call.1} parent=1 // pred_check_branch
      %54 = sbr.rel (0) target = $region33
    $region32: #{tpu_custom_call.1} parent=1 // pred_region
      _
    $region33: #{tpu_custom_call.1} parent=1 // pred_fallthru
      _
    // Predicated region
    $region34: #{tpu_custom_call.1} parent=1 // pred_check
      _
    $region35: #{tpu_custom_call.1} parent=1 // pred_check_branch
      %56 = sbr.rel (0) target = $region37
    $region36: #{tpu_custom_call.1} parent=1 // pred_region
      _
    $region37: #{tpu_custom_call.1} parent=1 // pred_fallthru
      _
    // Predicated region
    $region38: #{tpu_custom_call.1} parent=1 // pred_check
      _
    $region39: #{tpu_custom_call.1} parent=1 // pred_check_branch
      %58 = sbr.rel (0) target = $region41
    $region40: #{tpu_custom_call.1} parent=1 // pred_region
      %60 = dma.done [#allocation7], 512
    $region41: #{tpu_custom_call.1} parent=1 // pred_fallthru
      _
    // Predicated region
    $region42: #{tpu_custom_call.1} parent=1 // pred_check
      _
    $region43: #{tpu_custom_call.1} parent=1 // pred_check_branch
      %62 = sbr.rel (0) target = $region45
    $region44: #{tpu_custom_call.1} parent=1 // pred_region
      %64 = dma.done [#allocation10], 512
    $region45: #{tpu_custom_call.1} parent=1 // pred_fallthru
      _
    %v65 = vld [vmem:[%s0] sm:$0xff]
    %v66 = vld [vmem:[%s0 + $0x8] sm:$0xff]
    %v67 = vld [vmem:[%s3] sm:$0x1]
    %69 = vset.pattern.permute.xlu0 0
    %70 = vperm.xlu0 %69, %v65
    %v71 = vpop.permute.xlu0 %70
    %74 = vset.pattern.permute.xlu0 0
    %75 = vperm.xlu0 %74, %v66
    %v76 = vpop.permute.xlu0 %75
    %v79 = vperm.slane %v67, 0
    %v81 = vmul.f32 %v71, %v79
    %v82 = vmul.f32 %v76, %v79
    %v83 = vld [vmem:[%s5] sm:$0x1]
    %v85 = vperm.slane %v83, 0
    %v87 = vadd.f32 %v81, %v85
    %v88 = vadd.f32 %v82, %v85
    %89 = vst [vmem:[#allocation2] sm:$0xff] %v87
    %90 = vst [vmem:[#allocation2 + $0x8] sm:$0xff] %v88
    %v91 = vld [vmem:[%s4] sm:$0x1]
    %92 = vset.pattern.permute.xlu0 1
    %93 = vperm.xlu0 %92, %v65
    %v94 = vpop.permute.xlu0 %93
    %96 = vset.pattern.permute.xlu0 1
    %97 = vperm.xlu0 %96, %v66
    %v98 = vpop.permute.xlu0 %97
    %v101 = vperm.slane %v91, 0
    %v103 = vmul.f32 %v94, %v101
    %v104 = vmul.f32 %v98, %v101
    %v105 = vld [vmem:[%s6] sm:$0x1]
    %v107 = vperm.slane %v105, 0
    %v109 = vadd.f32 %v103, %v107
    %v110 = vadd.f32 %v104, %v107
    %111 = vst [vmem:[#allocation3] sm:$0xff] %v109
    %112 = vst [vmem:[#allocation3 + $0x8] sm:$0xff] %v110
    %v113 = vld [vmem:[#allocation2] sm:$0x3]
    %v114 = vld [vmem:[#allocation6] sm:$0xff]
    %v115 = vld [vmem:[#allocation6 + $0x8] sm:$0xff]
    %v116 = vld [vmem:[#allocation6 + $0x10] sm:$0xff]
    %v117 = vld [vmem:[#allocation6 + $0x18] sm:$0xff]
    %vm118 = vcmask 261120
    %v120 = vsel %vm118, 0.0, 0
    %122 = vmatpush.msra.mxu0 0.0
    %123 = vmatpush.msra.mxu0 0.0
    %124 = vmatpush.msra.mxu0 0.0
    %125 = vmatpush.msra.mxu0 0.0
    %126 = vmatpush.msra.mxu0 0.0
    %127 = vmatpush.msra.mxu0 0.0
    %128 = vmatpush.msra.mxu0 0.0
    %129 = vmatpush.msra.mxu0 0.0
    %130 = vmatpush.msra.mxu0 0.0
    %131 = vmatpush.msra.mxu0 0.0
    %132 = vmatpush.msra.mxu0 0.0
    %133 = vmatpush.msra.mxu0 0.0
    %134 = vmatpush.msra.mxu0 %v117
    %135 = vmatpush.msra.mxu0 %v116
    %136 = vmatpush.msra.mxu0 %v115
    %137 = vmatpush.msra.mxu0 %v114
    %138 = vmatmul.f32.gmra.mxu0 %v120
    %v139 = vpop.f32.mrf.mxu0
    %v140 = vadd.f32 0.0, %v139
    %141 = vdwg.mxu0
    %v142 = vadd.f32 %v113, %v140
    %v143 = vld [vmem:[#allocation3] sm:$0x3]
    %v144 = vld [vmem:[#allocation9] sm:$0xff]
    %v145 = vld [vmem:[#allocation9 + $0x8] sm:$0xff]
    %v146 = vld [vmem:[#allocation9 + $0x10] sm:$0xff]
    %v147 = vld [vmem:[#allocation9 + $0x18] sm:$0xff]
    %148 = vmatpush.msra.mxu0 0.0
    %149 = vmatpush.msra.mxu0 0.0
    %150 = vmatpush.msra.mxu0 0.0
    %151 = vmatpush.msra.mxu0 0.0
    %152 = vmatpush.msra.mxu0 0.0
    %153 = vmatpush.msra.mxu0 0.0
    %154 = vmatpush.msra.mxu0 0.0
    %155 = vmatpush.msra.mxu0 0.0
    %156 = vmatpush.msra.mxu0 0.0
    %157 = vmatpush.msra.mxu0 0.0
    %158 = vmatpush.msra.mxu0 0.0
    %159 = vmatpush.msra.mxu0 0.0
    %160 = vmatpush.msra.mxu0 %v147
    %161 = vmatpush.msra.mxu0 %v146
    %162 = vmatpush.msra.mxu0 %v145
    %163 = vmatpush.msra.mxu0 %v144
    %164 = vmatmul.f32.gmra.mxu0 %v120
    %v165 = vpop.f32.mrf.mxu0
    %v166 = vadd.f32 0.0, %v165
    %167 = vdwg.mxu0
    %v168 = vadd.f32 %v143, %v166
    %v169 = vxor.u32 %v142, 2147483648
    %v170 = vmul.f32 %v169, 1.442695
    %v171 = vpow.pop %v170
    %v172 = vadd.f32 %v171, 1.0
    %v173 = vrcp.pop %v172
    %v174 = vmul.f32 %v172, %v173
    %v175 = vsub.f32 1.0, %v174
    %v176 = vmul.f32 %v173, %v175
    %v177 = vadd.f32 %v173, %v176
    %vm178 = vweird.f32 %v172
    %vm179 = vweird.f32 %v173
    %vm180 = vmor %vm178, %vm179
    %v181 = vsel %vm180, %v173, %v177
    %v182 = vand.u32 2147483647, %v172
    %vm183 = vcmp.eq.f32.partialorder %v182, 8.507059e+37
    %v184 = vand.u32 %v172, 2147483648
    %v185 = vor.u32 1.1754944e-38, %v184
    %v186 = vsel %vm183, %v185, %v181
    %v187 = vmul.f32 1.0, %v186
    %v188 = vxor.u32 %v168, 2147483648
    %v189 = vmul.f32 %v188, 1.442695
    %v190 = vpow.pop %v189
    %v191 = vadd.f32 %v190, 1.0
    %v192 = vrcp.pop %v191
    %v193 = vmul.f32 %v191, %v192
    %v194 = vsub.f32 1.0, %v193
    %v195 = vmul.f32 %v192, %v194
    %v196 = vadd.f32 %v192, %v195
    %vm197 = vweird.f32 %v191
    %vm198 = vweird.f32 %v192
    %vm199 = vmor %vm197, %vm198
    %v200 = vsel %vm199, %v192, %v196
    %v201 = vand.u32 2147483647, %v191
    %vm202 = vcmp.eq.f32.partialorder %v201, 8.507059e+37
    %v203 = vand.u32 %v191, 2147483648
    %v204 = vor.u32 1.1754944e-38, %v203
    %v205 = vsel %vm202, %v204, %v200
    %v206 = vmul.f32 1.0, %v205
    %v207 = vtanh.pop %v142
    %v208 = vtanh.pop %v168
    %v209 = vmul.f32 %v187, 0.0
    %211 = vrot.lane.b32.xlu0 %v207, 32
    %v212 = vpop.permute.xlu0 %211
    %v214 = vmul.f32 %v187, %v212
    %216 = vrot.lane.b32.xlu0 %v214, 32
    %v217 = vpop.permute.xlu0 %216
    %v219 = vadd.f32 %v209, %v217
    %v220 = vmul.f32 %v206, 0.0
    %222 = vrot.lane.b32.xlu0 %v208, 32
    %v223 = vpop.permute.xlu0 %222
    %v225 = vmul.f32 %v206, %v223
    %227 = vrot.lane.b32.xlu0 %v225, 32
    %v228 = vpop.permute.xlu0 %227
    %v230 = vadd.f32 %v220, %v228
    %v231 = vtanh.pop %v219
    %233 = vrot.lane.b32.xlu0 %v231, 32
    %v234 = vpop.permute.xlu0 %233
    %v236 = vmul.f32 %v187, %v234
    %v237 = vtanh.pop %v230
    %239 = vrot.lane.b32.xlu0 %v237, 32
    %v240 = vpop.permute.xlu0 %239
    %v242 = vmul.f32 %v206, %v240
    %244 = vrot.lane.b32.xlu0 %v236, 64
    %v245 = vpop.permute.xlu0 %244
    %vm247 = vcmask 254976
    %248 = vst.msk [vmem:[#allocation4] sm:$0x3] %vm247, %v245
    %250 = vrot.lane.b32.xlu0 %v242, 64
    %v251 = vpop.permute.xlu0 %250
    %s253 = scalar_lea.vmem [#allocation5], 14
    %254 = vst.msk [vmem:[%s253] sm:$0x3] %vm247, %v251
    %v255 = vld [vmem:[#allocation2 + $0x2] sm:$0x3]
    %v256 = vld [vmem:[#allocation6] sm:$0xff]
    %v257 = vld [vmem:[#allocation6 + $0x8] sm:$0xff]
    %v258 = vld [vmem:[#allocation6 + $0x10] sm:$0xff]
    %v259 = vld [vmem:[#allocation6 + $0x18] sm:$0xff]
    %v260 = vsel %vm118, %v245, 0
    %262 = vmatpush.msra.mxu0 0.0
    %263 = vmatpush.msra.mxu0 0.0
    %264 = vmatpush.msra.mxu0 0.0
    %265 = vmatpush.msra.mxu0 0.0
    %266 = vmatpush.msra.mxu0 0.0
    %267 = vmatpush.msra.mxu0 0.0
    %268 = vmatpush.msra.mxu0 0.0
    %269 = vmatpush.msra.mxu0 0.0
    %270 = vmatpush.msra.mxu0 0.0
    %271 = vmatpush.msra.mxu0 0.0
    %272 = vmatpush.msra.mxu0 0.0
    %273 = vmatpush.msra.mxu0 0.0
    %274 = vmatpush.msra.mxu0 %v259
    %275 = vmatpush.msra.mxu0 %v258
    %276 = vmatpush.msra.mxu0 %v257
    %277 = vmatpush.msra.mxu0 %v256
    %278 = vmatmul.f32.gmra.mxu0 %v260
    %v279 = vpop.f32.mrf.mxu0
    %v280 = vadd.f32 0.0, %v279
    %281 = vdwg.mxu0
    %v282 = vadd.f32 %v255, %v280
    %v283 = vld [vmem:[#allocation3 + $0x2] sm:$0x3]
    %v284 = vld [vmem:[#allocation9] sm:$0xff]
    %v285 = vld [vmem:[#allocation9 + $0x8] sm:$0xff]
    %v286 = vld [vmem:[#allocation9 + $0x10] sm:$0xff]
    %v287 = vld [vmem:[#allocation9 + $0x18] sm:$0xff]
    %v288 = vsel %vm118, %v251, 0
    %290 = vmatpush.msra.mxu0 0.0
    %291 = vmatpush.msra.mxu0 0.0
    %292 = vmatpush.msra.mxu0 0.0
    %293 = vmatpush.msra.mxu0 0.0
    %294 = vmatpush.msra.mxu0 0.0
    %295 = vmatpush.msra.mxu0 0.0
    %296 = vmatpush.msra.mxu0 0.0
    %297 = vmatpush.msra.mxu0 0.0
    %298 = vmatpush.msra.mxu0 0.0
    %299 = vmatpush.msra.mxu0 0.0
    %300 = vmatpush.msra.mxu0 0.0
    %301 = vmatpush.msra.mxu0 0.0
    %302 = vmatpush.msra.mxu0 %v287
    %303 = vmatpush.msra.mxu0 %v286
    %304 = vmatpush.msra.mxu0 %v285
    %305 = vmatpush.msra.mxu0 %v284
    %306 = vmatmul.f32.gmra.mxu0 %v288
    %v307 = vpop.f32.mrf.mxu0
    %v308 = vadd.f32 0.0, %v307
    %309 = vdwg.mxu0
    %v310 = vadd.f32 %v283, %v308
    %v311 = vxor.u32 %v282, 2147483648
    %v312 = vmul.f32 %v311, 1.442695
    %v313 = vpow.pop %v312
    %v314 = vadd.f32 %v313, 1.0
    %v315 = vrcp.pop %v314
    %v316 = vmul.f32 %v314, %v315
    %v317 = vsub.f32 1.0, %v316
    %v318 = vmul.f32 %v315, %v317
    %v319 = vadd.f32 %v315, %v318
    %vm320 = vweird.f32 %v314
    %vm321 = vweird.f32 %v315
    %vm322 = vmor %vm320, %vm321
    %v323 = vsel %vm322, %v315, %v319
    %v324 = vand.u32 2147483647, %v314
    %vm325 = vcmp.eq.f32.partialorder %v324, 8.507059e+37
    %v326 = vand.u32 %v314, 2147483648
    %v327 = vor.u32 1.1754944e-38, %v326
    %v328 = vsel %vm325, %v327, %v323
    %v329 = vmul.f32 1.0, %v328
    %v330 = vxor.u32 %v310, 2147483648
    %v331 = vmul.f32 %v330, 1.442695
    %v332 = vpow.pop %v331
    %v333 = vadd.f32 %v332, 1.0
    %v334 = vrcp.pop %v333
    %v335 = vmul.f32 %v333, %v334
    %v336 = vsub.f32 1.0, %v335
    %v337 = vmul.f32 %v334, %v336
    %v338 = vadd.f32 %v334, %v337
    %vm339 = vweird.f32 %v333
    %vm340 = vweird.f32 %v334
    %vm341 = vmor %vm339, %vm340
    %v342 = vsel %vm341, %v334, %v338
    %v343 = vand.u32 2147483647, %v333
    %vm344 = vcmp.eq.f32.partialorder %v343, 8.507059e+37
    %v345 = vand.u32 %v333, 2147483648
    %v346 = vor.u32 1.1754944e-38, %v345
    %v347 = vsel %vm344, %v346, %v342
    %v348 = vmul.f32 1.0, %v347
    %v349 = vtanh.pop %v282
    %v350 = vtanh.pop %v310
    %v351 = vmul.f32 %v329, %v219
    %353 = vrot.lane.b32.xlu0 %v349, 32
    %v354 = vpop.permute.xlu0 %353
    %v356 = vmul.f32 %v329, %v354
    %358 = vrot.lane.b32.xlu0 %v356, 32
    %v359 = vpop.permute.xlu0 %358
    %v361 = vadd.f32 %v351, %v359
    %v362 = vmul.f32 %v348, %v230
    %364 = vrot.lane.b32.xlu0 %v350, 32
    %v365 = vpop.permute.xlu0 %364
    %v367 = vmul.f32 %v348, %v365
    %369 = vrot.lane.b32.xlu0 %v367, 32
    %v370 = vpop.permute.xlu0 %369
    %v372 = vadd.f32 %v362, %v370
    %v373 = vtanh.pop %v361
    %375 = vrot.lane.b32.xlu0 %v373, 32
    %v376 = vpop.permute.xlu0 %375
    %v378 = vmul.f32 %v329, %v376
    %v379 = vtanh.pop %v372
    %381 = vrot.lane.b32.xlu0 %v379, 32
    %v382 = vpop.permute.xlu0 %381
    %v384 = vmul.f32 %v348, %v382
    %386 = vrot.lane.b32.xlu0 %v378, 64
    %v387 = vpop.permute.xlu0 %386
    %s389 = scalar_lea.vmem [#allocation4], 2
    %390 = vst.msk [vmem:[%s389] sm:$0x3] %vm247, %v387
    %392 = vrot.lane.b32.xlu0 %v384, 64
    %v393 = vpop.permute.xlu0 %392
    %s395 = scalar_lea.vmem [#allocation5], 12
    %396 = vst.msk [vmem:[%s395] sm:$0x3] %vm247, %v393
    %v397 = vld [vmem:[#allocation2 + $0x4] sm:$0x3]
    %v398 = vld [vmem:[#allocation6] sm:$0xff]
    %v399 = vld [vmem:[#allocation6 + $0x8] sm:$0xff]
    %v400 = vld [vmem:[#allocation6 + $0x10] sm:$0xff]
    %v401 = vld [vmem:[#allocation6 + $0x18] sm:$0xff]
    %v402 = vsel %vm118, %v387, 0
    %404 = vmatpush.msra.mxu0 0.0
    %405 = vmatpush.msra.mxu0 0.0
    %406 = vmatpush.msra.mxu0 0.0
    %407 = vmatpush.msra.mxu0 0.0
    %408 = vmatpush.msra.mxu0 0.0
    %409 = vmatpush.msra.mxu0 0.0
    %410 = vmatpush.msra.mxu0 0.0
    %411 = vmatpush.msra.mxu0 0.0
    %412 = vmatpush.msra.mxu0 0.0
    %413 = vmatpush.msra.mxu0 0.0
    %414 = vmatpush.msra.mxu0 0.0
    %415 = vmatpush.msra.mxu0 0.0
    %416 = vmatpush.msra.mxu0 %v401
    %417 = vmatpush.msra.mxu0 %v400
    %418 = vmatpush.msra.mxu0 %v399
    %419 = vmatpush.msra.mxu0 %v398
    %420 = vmatmul.f32.gmra.mxu0 %v402
    %v421 = vpop.f32.mrf.mxu0
    %v422 = vadd.f32 0.0, %v421
    %423 = vdwg.mxu0
    %v424 = vadd.f32 %v397, %v422
    %v425 = vld [vmem:[#allocation3 + $0x4] sm:$0x3]
    %v426 = vld [vmem:[#allocation9] sm:$0xff]
    %v427 = vld [vmem:[#allocation9 + $0x8] sm:$0xff]
    %v428 = vld [vmem:[#allocation9 + $0x10] sm:$0xff]
    %v429 = vld [vmem:[#allocation9 + $0x18] sm:$0xff]
    %v430 = vsel %vm118, %v393, 0
    %432 = vmatpush.msra.mxu0 0.0
    %433 = vmatpush.msra.mxu0 0.0
    %434 = vmatpush.msra.mxu0 0.0
    %435 = vmatpush.msra.mxu0 0.0
    %436 = vmatpush.msra.mxu0 0.0
    %437 = vmatpush.msra.mxu0 0.0
    %438 = vmatpush.msra.mxu0 0.0
    %439 = vmatpush.msra.mxu0 0.0
    %440 = vmatpush.msra.mxu0 0.0
    %441 = vmatpush.msra.mxu0 0.0
    %442 = vmatpush.msra.mxu0 0.0
    %443 = vmatpush.msra.mxu0 0.0
    %444 = vmatpush.msra.mxu0 %v429
    %445 = vmatpush.msra.mxu0 %v428
    %446 = vmatpush.msra.mxu0 %v427
    %447 = vmatpush.msra.mxu0 %v426
    %448 = vmatmul.f32.gmra.mxu0 %v430
    %v449 = vpop.f32.mrf.mxu0
    %v450 = vadd.f32 0.0, %v449
    %451 = vdwg.mxu0
    %v452 = vadd.f32 %v425, %v450
    %v453 = vxor.u32 %v424, 2147483648
    %v454 = vmul.f32 %v453, 1.442695
    %v455 = vpow.pop %v454
    %v456 = vadd.f32 %v455, 1.0
    %v457 = vrcp.pop %v456
    %v458 = vmul.f32 %v456, %v457
    %v459 = vsub.f32 1.0, %v458
    %v460 = vmul.f32 %v457, %v459
    %v461 = vadd.f32 %v457, %v460
    %vm462 = vweird.f32 %v456
    %vm463 = vweird.f32 %v457
    %vm464 = vmor %vm462, %vm463
    %v465 = vsel %vm464, %v457, %v461
    %v466 = vand.u32 2147483647, %v456
    %vm467 = vcmp.eq.f32.partialorder %v466, 8.507059e+37
    %v468 = vand.u32 %v456, 2147483648
    %v469 = vor.u32 1.1754944e-38, %v468
    %v470 = vsel %vm467, %v469, %v465
    %v471 = vmul.f32 1.0, %v470
    %v472 = vxor.u32 %v452, 2147483648
    %v473 = vmul.f32 %v472, 1.442695
    %v474 = vpow.pop %v473
    %v475 = vadd.f32 %v474, 1.0
    %v476 = vrcp.pop %v475
    %v477 = vmul.f32 %v475, %v476
    %v478 = vsub.f32 1.0, %v477
    %v479 = vmul.f32 %v476, %v478
    %v480 = vadd.f32 %v476, %v479
    %vm481 = vweird.f32 %v475
    %vm482 = vweird.f32 %v476
    %vm483 = vmor %vm481, %vm482
    %v484 = vsel %vm483, %v476, %v480
    %v485 = vand.u32 2147483647, %v475
    %vm486 = vcmp.eq.f32.partialorder %v485, 8.507059e+37
    %v487 = vand.u32 %v475, 2147483648
    %v488 = vor.u32 1.1754944e-38, %v487
    %v489 = vsel %vm486, %v488, %v484
    %v490 = vmul.f32 1.0, %v489
    %v491 = vtanh.pop %v424
    %v492 = vtanh.pop %v452
    %v493 = vmul.f32 %v471, %v361
    %495 = vrot.lane.b32.xlu0 %v491, 32
    %v496 = vpop.permute.xlu0 %495
    %v498 = vmul.f32 %v471, %v496
    %500 = vrot.lane.b32.xlu0 %v498, 32
    %v501 = vpop.permute.xlu0 %500
    %v503 = vadd.f32 %v493, %v501
    %v504 = vmul.f32 %v490, %v372
    %506 = vrot.lane.b32.xlu0 %v492, 32
    %v507 = vpop.permute.xlu0 %506
    %v509 = vmul.f32 %v490, %v507
    %511 = vrot.lane.b32.xlu0 %v509, 32
    %v512 = vpop.permute.xlu0 %511
    %v514 = vadd.f32 %v504, %v512
    %v515 = vtanh.pop %v503
    %517 = vrot.lane.b32.xlu0 %v515, 32
    %v518 = vpop.permute.xlu0 %517
    %v520 = vmul.f32 %v471, %v518
    %v521 = vtanh.pop %v514
    %523 = vrot.lane.b32.xlu0 %v521, 32
    %v524 = vpop.permute.xlu0 %523
    %v526 = vmul.f32 %v490, %v524
    %528 = vrot.lane.b32.xlu0 %v520, 64
    %v529 = vpop.permute.xlu0 %528
    %s531 = scalar_lea.vmem [#allocation4], 4
    %532 = vst.msk [vmem:[%s531] sm:$0x3] %vm247, %v529
    %534 = vrot.lane.b32.xlu0 %v526, 64
    %v535 = vpop.permute.xlu0 %534
    %s537 = scalar_lea.vmem [#allocation5], 10
    %538 = vst.msk [vmem:[%s537] sm:$0x3] %vm247, %v535
    %v539 = vld [vmem:[#allocation2 + $0x6] sm:$0x3]
    %v540 = vld [vmem:[#allocation6] sm:$0xff]
    %v541 = vld [vmem:[#allocation6 + $0x8] sm:$0xff]
    %v542 = vld [vmem:[#allocation6 + $0x10] sm:$0xff]
    %v543 = vld [vmem:[#allocation6 + $0x18] sm:$0xff]
    %v544 = vsel %vm118, %v529, 0
    %546 = vmatpush.msra.mxu0 0.0
    %547 = vmatpush.msra.mxu0 0.0
    %548 = vmatpush.msra.mxu0 0.0
    %549 = vmatpush.msra.mxu0 0.0
    %550 = vmatpush.msra.mxu0 0.0
    %551 = vmatpush.msra.mxu0 0.0
    %552 = vmatpush.msra.mxu0 0.0
    %553 = vmatpush.msra.mxu0 0.0
    %554 = vmatpush.msra.mxu0 0.0
    %555 = vmatpush.msra.mxu0 0.0
    %556 = vmatpush.msra.mxu0 0.0
    %557 = vmatpush.msra.mxu0 0.0
    %558 = vmatpush.msra.mxu0 %v543
    %559 = vmatpush.msra.mxu0 %v542
    %560 = vmatpush.msra.mxu0 %v541
    %561 = vmatpush.msra.mxu0 %v540
    %562 = vmatmul.f32.gmra.mxu0 %v544
    %v563 = vpop.f32.mrf.mxu0
    %v564 = vadd.f32 0.0, %v563
    %565 = vdwg.mxu0
    %v566 = vadd.f32 %v539, %v564
    %v567 = vld [vmem:[#allocation3 + $0x6] sm:$0x3]
    %v568 = vld [vmem:[#allocation9] sm:$0xff]
    %v569 = vld [vmem:[#allocation9 + $0x8] sm:$0xff]
    %v570 = vld [vmem:[#allocation9 + $0x10] sm:$0xff]
    %v571 = vld [vmem:[#allocation9 + $0x18] sm:$0xff]
    %v572 = vsel %vm118, %v535, 0
    %574 = vmatpush.msra.mxu0 0.0
    %575 = vmatpush.msra.mxu0 0.0
    %576 = vmatpush.msra.mxu0 0.0
    %577 = vmatpush.msra.mxu0 0.0
    %578 = vmatpush.msra.mxu0 0.0
    %579 = vmatpush.msra.mxu0 0.0
    %580 = vmatpush.msra.mxu0 0.0
    %581 = vmatpush.msra.mxu0 0.0
    %582 = vmatpush.msra.mxu0 0.0
    %583 = vmatpush.msra.mxu0 0.0
    %584 = vmatpush.msra.mxu0 0.0
    %585 = vmatpush.msra.mxu0 0.0
    %586 = vmatpush.msra.mxu0 %v571
    %587 = vmatpush.msra.mxu0 %v570
    %588 = vmatpush.msra.mxu0 %v569
    %589 = vmatpush.msra.mxu0 %v568
    %590 = vmatmul.f32.gmra.mxu0 %v572
    %v591 = vpop.f32.mrf.mxu0
    %v592 = vadd.f32 0.0, %v591
    %593 = vdwg.mxu0
    %v594 = vadd.f32 %v567, %v592
    %v595 = vxor.u32 %v566, 2147483648
    %v596 = vmul.f32 %v595, 1.442695
    %v597 = vpow.pop %v596
    %v598 = vadd.f32 %v597, 1.0
    %v599 = vrcp.pop %v598
    %v600 = vmul.f32 %v598, %v599
    %v601 = vsub.f32 1.0, %v600
    %v602 = vmul.f32 %v599, %v601
    %v603 = vadd.f32 %v599, %v602
    %vm604 = vweird.f32 %v598
    %vm605 = vweird.f32 %v599
    %vm606 = vmor %vm604, %vm605
    %v607 = vsel %vm606, %v599, %v603
    %v608 = vand.u32 2147483647, %v598
    %vm609 = vcmp.eq.f32.partialorder %v608, 8.507059e+37
    %v610 = vand.u32 %v598, 2147483648
    %v611 = vor.u32 1.1754944e-38, %v610
    %v612 = vsel %vm609, %v611, %v607
    %v613 = vmul.f32 1.0, %v612
    %v614 = vxor.u32 %v594, 2147483648
    %v615 = vmul.f32 %v614, 1.442695
    %v616 = vpow.pop %v615
    %v617 = vadd.f32 %v616, 1.0
    %v618 = vrcp.pop %v617
    %v619 = vmul.f32 %v617, %v618
    %v620 = vsub.f32 1.0, %v619
    %v621 = vmul.f32 %v618, %v620
    %v622 = vadd.f32 %v618, %v621
    %vm623 = vweird.f32 %v617
    %vm624 = vweird.f32 %v618
    %vm625 = vmor %vm623, %vm624
    %v626 = vsel %vm625, %v618, %v622
    %v627 = vand.u32 2147483647, %v617
    %vm628 = vcmp.eq.f32.partialorder %v627, 8.507059e+37
    %v629 = vand.u32 %v617, 2147483648
    %v630 = vor.u32 1.1754944e-38, %v629
    %v631 = vsel %vm628, %v630, %v626
    %v632 = vmul.f32 1.0, %v631
    %v633 = vtanh.pop %v566
    %v634 = vtanh.pop %v594
    %v635 = vmul.f32 %v613, %v503
    %637 = vrot.lane.b32.xlu0 %v633, 32
    %v638 = vpop.permute.xlu0 %637
    %v640 = vmul.f32 %v613, %v638
    %642 = vrot.lane.b32.xlu0 %v640, 32
    %v643 = vpop.permute.xlu0 %642
    %v645 = vadd.f32 %v635, %v643
    %v646 = vmul.f32 %v632, %v514
    %648 = vrot.lane.b32.xlu0 %v634, 32
    %v649 = vpop.permute.xlu0 %648
    %v651 = vmul.f32 %v632, %v649
    %653 = vrot.lane.b32.xlu0 %v651, 32
    %v654 = vpop.permute.xlu0 %653
    %v656 = vadd.f32 %v646, %v654
    %v657 = vtanh.pop %v645
    %659 = vrot.lane.b32.xlu0 %v657, 32
    %v660 = vpop.permute.xlu0 %659
    %v662 = vmul.f32 %v613, %v660
    %v663 = vtanh.pop %v656
    %665 = vrot.lane.b32.xlu0 %v663, 32
    %v666 = vpop.permute.xlu0 %665
    %v668 = vmul.f32 %v632, %v666
    %670 = vrot.lane.b32.xlu0 %v662, 64
    %v671 = vpop.permute.xlu0 %670
    %s673 = scalar_lea.vmem [#allocation4], 6
    %674 = vst.msk [vmem:[%s673] sm:$0x3] %vm247, %v671
    %676 = vrot.lane.b32.xlu0 %v668, 64
    %v677 = vpop.permute.xlu0 %676
    %s679 = scalar_lea.vmem [#allocation5], 8
    %680 = vst.msk [vmem:[%s679] sm:$0x3] %vm247, %v677
    %v681 = vld [vmem:[#allocation2 + $0x8] sm:$0x3]
    %v682 = vld [vmem:[#allocation6] sm:$0xff]
    %v683 = vld [vmem:[#allocation6 + $0x8] sm:$0xff]
    %v684 = vld [vmem:[#allocation6 + $0x10] sm:$0xff]
    %v685 = vld [vmem:[#allocation6 + $0x18] sm:$0xff]
    %v686 = vsel %vm118, %v671, 0
    %688 = vmatpush.msra.mxu0 0.0
    %689 = vmatpush.msra.mxu0 0.0
    %690 = vmatpush.msra.mxu0 0.0
    %691 = vmatpush.msra.mxu0 0.0
    %692 = vmatpush.msra.mxu0 0.0
    %693 = vmatpush.msra.mxu0 0.0
    %694 = vmatpush.msra.mxu0 0.0
    %695 = vmatpush.msra.mxu0 0.0
    %696 = vmatpush.msra.mxu0 0.0
    %697 = vmatpush.msra.mxu0 0.0
    %698 = vmatpush.msra.mxu0 0.0
    %699 = vmatpush.msra.mxu0 0.0
    %700 = vmatpush.msra.mxu0 %v685
    %701 = vmatpush.msra.mxu0 %v684
    %702 = vmatpush.msra.mxu0 %v683
    %703 = vmatpush.msra.mxu0 %v682
    %704 = vmatmul.f32.gmra.mxu0 %v686
    %v705 = vpop.f32.mrf.mxu0
    %v706 = vadd.f32 0.0, %v705
    %707 = vdwg.mxu0
    %v708 = vadd.f32 %v681, %v706
    %v709 = vld [vmem:[#allocation3 + $0x8] sm:$0x3]
    %v710 = vld [vmem:[#allocation9] sm:$0xff]
    %v711 = vld [vmem:[#allocation9 + $0x8] sm:$0xff]
    %v712 = vld [vmem:[#allocation9 + $0x10] sm:$0xff]
    %v713 = vld [vmem:[#allocation9 + $0x18] sm:$0xff]
    %v714 = vsel %vm118, %v677, 0
    %716 = vmatpush.msra.mxu0 0.0
    %717 = vmatpush.msra.mxu0 0.0
    %718 = vmatpush.msra.mxu0 0.0
    %719 = vmatpush.msra.mxu0 0.0
    %720 = vmatpush.msra.mxu0 0.0
    %721 = vmatpush.msra.mxu0 0.0
    %722 = vmatpush.msra.mxu0 0.0
    %723 = vmatpush.msra.mxu0 0.0
    %724 = vmatpush.msra.mxu0 0.0
    %725 = vmatpush.msra.mxu0 0.0
    %726 = vmatpush.msra.mxu0 0.0
    %727 = vmatpush.msra.mxu0 0.0
    %728 = vmatpush.msra.mxu0 %v713
    %729 = vmatpush.msra.mxu0 %v712
    %730 = vmatpush.msra.mxu0 %v711
    %731 = vmatpush.msra.mxu0 %v710
    %732 = vmatmul.f32.gmra.mxu0 %v714
    %v733 = vpop.f32.mrf.mxu0
    %v734 = vadd.f32 0.0, %v733
    %735 = vdwg.mxu0
    %v736 = vadd.f32 %v709, %v734
    %v737 = vxor.u32 %v708, 2147483648
    %v738 = vmul.f32 %v737, 1.442695
    %v739 = vpow.pop %v738
    %v740 = vadd.f32 %v739, 1.0
    %v741 = vrcp.pop %v740
    %v742 = vmul.f32 %v740, %v741
    %v743 = vsub.f32 1.0, %v742
    %v744 = vmul.f32 %v741, %v743
    %v745 = vadd.f32 %v741, %v744
    %vm746 = vweird.f32 %v740
    %vm747 = vweird.f32 %v741
    %vm748 = vmor %vm746, %vm747
    %v749 = vsel %vm748, %v741, %v745
    %v750 = vand.u32 2147483647, %v740
    %vm751 = vcmp.eq.f32.partialorder %v750, 8.507059e+37
    %v752 = vand.u32 %v740, 2147483648
    %v753 = vor.u32 1.1754944e-38, %v752
    %v754 = vsel %vm751, %v753, %v749
    %v755 = vmul.f32 1.0, %v754
    %v756 = vxor.u32 %v736, 2147483648
    %v757 = vmul.f32 %v756, 1.442695
    %v758 = vpow.pop %v757
    %v759 = vadd.f32 %v758, 1.0
    %v760 = vrcp.pop %v759
    %v761 = vmul.f32 %v759, %v760
    %v762 = vsub.f32 1.0, %v761
    %v763 = vmul.f32 %v760, %v762
    %v764 = vadd.f32 %v760, %v763
    %vm765 = vweird.f32 %v759
    %vm766 = vweird.f32 %v760
    %vm767 = vmor %vm765, %vm766
    %v768 = vsel %vm767, %v760, %v764
    %v769 = vand.u32 2147483647, %v759
    %vm770 = vcmp.eq.f32.partialorder %v769, 8.507059e+37
    %v771 = vand.u32 %v759, 2147483648
    %v772 = vor.u32 1.1754944e-38, %v771
    %v773 = vsel %vm770, %v772, %v768
    %v774 = vmul.f32 1.0, %v773
    %v775 = vtanh.pop %v708
    %v776 = vtanh.pop %v736
    %v777 = vmul.f32 %v755, %v645
    %779 = vrot.lane.b32.xlu0 %v775, 32
    %v780 = vpop.permute.xlu0 %779
    %v782 = vmul.f32 %v755, %v780
    %784 = vrot.lane.b32.xlu0 %v782, 32
    %v785 = vpop.permute.xlu0 %784
    %v787 = vadd.f32 %v777, %v785
    %v788 = vmul.f32 %v774, %v656
    %790 = vrot.lane.b32.xlu0 %v776, 32
    %v791 = vpop.permute.xlu0 %790
    %v793 = vmul.f32 %v774, %v791
    %795 = vrot.lane.b32.xlu0 %v793, 32
    %v796 = vpop.permute.xlu0 %795
    %v798 = vadd.f32 %v788, %v796
    %v799 = vtanh.pop %v787
    %801 = vrot.lane.b32.xlu0 %v799, 32
    %v802 = vpop.permute.xlu0 %801
    %v804 = vmul.f32 %v755, %v802
    %v805 = vtanh.pop %v798
    %807 = vrot.lane.b32.xlu0 %v805, 32
    %v808 = vpop.permute.xlu0 %807
    %v810 = vmul.f32 %v774, %v808
    %812 = vrot.lane.b32.xlu0 %v804, 64
    %v813 = vpop.permute.xlu0 %812
    %s815 = scalar_lea.vmem [#allocation4], 8
    %816 = vst.msk [vmem:[%s815] sm:$0x3] %vm247, %v813
    %818 = vrot.lane.b32.xlu0 %v810, 64
    %v819 = vpop.permute.xlu0 %818
    %s821 = scalar_lea.vmem [#allocation5], 6
    %822 = vst.msk [vmem:[%s821] sm:$0x3] %vm247, %v819
    %v823 = vld [vmem:[#allocation2 + $0xa] sm:$0x3]
    %v824 = vld [vmem:[#allocation6] sm:$0xff]
    %v825 = vld [vmem:[#allocation6 + $0x8] sm:$0xff]
    %v826 = vld [vmem:[#allocation6 + $0x10] sm:$0xff]
    %v827 = vld [vmem:[#allocation6 + $0x18] sm:$0xff]
    %v828 = vsel %vm118, %v813, 0
    %830 = vmatpush.msra.mxu0 0.0
    %831 = vmatpush.msra.mxu0 0.0
    %832 = vmatpush.msra.mxu0 0.0
    %833 = vmatpush.msra.mxu0 0.0
    %834 = vmatpush.msra.mxu0 0.0
    %835 = vmatpush.msra.mxu0 0.0
    %836 = vmatpush.msra.mxu0 0.0
    %837 = vmatpush.msra.mxu0 0.0
    %838 = vmatpush.msra.mxu0 0.0
    %839 = vmatpush.msra.mxu0 0.0
    %840 = vmatpush.msra.mxu0 0.0
    %841 = vmatpush.msra.mxu0 0.0
    %842 = vmatpush.msra.mxu0 %v827
    %843 = vmatpush.msra.mxu0 %v826
    %844 = vmatpush.msra.mxu0 %v825
    %845 = vmatpush.msra.mxu0 %v824
    %846 = vmatmul.f32.gmra.mxu0 %v828
    %v847 = vpop.f32.mrf.mxu0
    %v848 = vadd.f32 0.0, %v847
    %849 = vdwg.mxu0
    %v850 = vadd.f32 %v823, %v848
    %v851 = vld [vmem:[#allocation3 + $0xa] sm:$0x3]
    %v852 = vld [vmem:[#allocation9] sm:$0xff]
    %v853 = vld [vmem:[#allocation9 + $0x8] sm:$0xff]
    %v854 = vld [vmem:[#allocation9 + $0x10] sm:$0xff]
    %v855 = vld [vmem:[#allocation9 + $0x18] sm:$0xff]
    %v856 = vsel %vm118, %v819, 0
    %858 = vmatpush.msra.mxu0 0.0
    %859 = vmatpush.msra.mxu0 0.0
    %860 = vmatpush.msra.mxu0 0.0
    %861 = vmatpush.msra.mxu0 0.0
    %862 = vmatpush.msra.mxu0 0.0
    %863 = vmatpush.msra.mxu0 0.0
    %864 = vmatpush.msra.mxu0 0.0
    %865 = vmatpush.msra.mxu0 0.0
    %866 = vmatpush.msra.mxu0 0.0
    %867 = vmatpush.msra.mxu0 0.0
    %868 = vmatpush.msra.mxu0 0.0
    %869 = vmatpush.msra.mxu0 0.0
    %870 = vmatpush.msra.mxu0 %v855
    %871 = vmatpush.msra.mxu0 %v854
    %872 = vmatpush.msra.mxu0 %v853
    %873 = vmatpush.msra.mxu0 %v852
    %874 = vmatmul.f32.gmra.mxu0 %v856
    %v875 = vpop.f32.mrf.mxu0
    %v876 = vadd.f32 0.0, %v875
    %877 = vdwg.mxu0
    %v878 = vadd.f32 %v851, %v876
    %v879 = vxor.u32 %v850, 2147483648
    %v880 = vmul.f32 %v879, 1.442695
    %v881 = vpow.pop %v880
    %v882 = vadd.f32 %v881, 1.0
    %v883 = vrcp.pop %v882
    %v884 = vmul.f32 %v882, %v883
    %v885 = vsub.f32 1.0, %v884
    %v886 = vmul.f32 %v883, %v885
    %v887 = vadd.f32 %v883, %v886
    %vm888 = vweird.f32 %v882
    %vm889 = vweird.f32 %v883
    %vm890 = vmor %vm888, %vm889
    %v891 = vsel %vm890, %v883, %v887
    %v892 = vand.u32 2147483647, %v882
    %vm893 = vcmp.eq.f32.partialorder %v892, 8.507059e+37
    %v894 = vand.u32 %v882, 2147483648
    %v895 = vor.u32 1.1754944e-38, %v894
    %v896 = vsel %vm893, %v895, %v891
    %v897 = vmul.f32 1.0, %v896
    %v898 = vxor.u32 %v878, 2147483648
    %v899 = vmul.f32 %v898, 1.442695
    %v900 = vpow.pop %v899
    %v901 = vadd.f32 %v900, 1.0
    %v902 = vrcp.pop %v901
    %v903 = vmul.f32 %v901, %v902
    %v904 = vsub.f32 1.0, %v903
    %v905 = vmul.f32 %v902, %v904
    %v906 = vadd.f32 %v902, %v905
    %vm907 = vweird.f32 %v901
    %vm908 = vweird.f32 %v902
    %vm909 = vmor %vm907, %vm908
    %v910 = vsel %vm909, %v902, %v906
    %v911 = vand.u32 2147483647, %v901
    %vm912 = vcmp.eq.f32.partialorder %v911, 8.507059e+37
    %v913 = vand.u32 %v901, 2147483648
    %v914 = vor.u32 1.1754944e-38, %v913
    %v915 = vsel %vm912, %v914, %v910
    %v916 = vmul.f32 1.0, %v915
    %v917 = vtanh.pop %v850
    %v918 = vtanh.pop %v878
    %v919 = vmul.f32 %v897, %v787
    %921 = vrot.lane.b32.xlu0 %v917, 32
    %v922 = vpop.permute.xlu0 %921
    %v924 = vmul.f32 %v897, %v922
    %926 = vrot.lane.b32.xlu0 %v924, 32
    %v927 = vpop.permute.xlu0 %926
    %v929 = vadd.f32 %v919, %v927
    %v930 = vmul.f32 %v916, %v798
    %932 = vrot.lane.b32.xlu0 %v918, 32
    %v933 = vpop.permute.xlu0 %932
    %v935 = vmul.f32 %v916, %v933
    %937 = vrot.lane.b32.xlu0 %v935, 32
    %v938 = vpop.permute.xlu0 %937
    %v940 = vadd.f32 %v930, %v938
    %v941 = vtanh.pop %v929
    %943 = vrot.lane.b32.xlu0 %v941, 32
    %v944 = vpop.permute.xlu0 %943
    %v946 = vmul.f32 %v897, %v944
    %v947 = vtanh.pop %v940
    %949 = vrot.lane.b32.xlu0 %v947, 32
    %v950 = vpop.permute.xlu0 %949
    %v952 = vmul.f32 %v916, %v950
    %954 = vrot.lane.b32.xlu0 %v946, 64
    %v955 = vpop.permute.xlu0 %954
    %s957 = scalar_lea.vmem [#allocation4], 10
    %958 = vst.msk [vmem:[%s957] sm:$0x3] %vm247, %v955
    %960 = vrot.lane.b32.xlu0 %v952, 64
    %v961 = vpop.permute.xlu0 %960
    %s963 = scalar_lea.vmem [#allocation5], 4
    %964 = vst.msk [vmem:[%s963] sm:$0x3] %vm247, %v961
    %v965 = vld [vmem:[#allocation2 + $0xc] sm:$0x3]
    %v966 = vld [vmem:[#allocation6] sm:$0xff]
    %v967 = vld [vmem:[#allocation6 + $0x8] sm:$0xff]
    %v968 = vld [vmem:[#allocation6 + $0x10] sm:$0xff]
    %v969 = vld [vmem:[#allocation6 + $0x18] sm:$0xff]
    %v970 = vsel %vm118, %v955, 0
    %972 = vmatpush.msra.mxu0 0.0
    %973 = vmatpush.msra.mxu0 0.0
    %974 = vmatpush.msra.mxu0 0.0
    %975 = vmatpush.msra.mxu0 0.0
    %976 = vmatpush.msra.mxu0 0.0
    %977 = vmatpush.msra.mxu0 0.0
    %978 = vmatpush.msra.mxu0 0.0
    %979 = vmatpush.msra.mxu0 0.0
    %980 = vmatpush.msra.mxu0 0.0
    %981 = vmatpush.msra.mxu0 0.0
    %982 = vmatpush.msra.mxu0 0.0
    %983 = vmatpush.msra.mxu0 0.0
    %984 = vmatpush.msra.mxu0 %v969
    %985 = vmatpush.msra.mxu0 %v968
    %986 = vmatpush.msra.mxu0 %v967
    %987 = vmatpush.msra.mxu0 %v966
    %988 = vmatmul.f32.gmra.mxu0 %v970
    %v989 = vpop.f32.mrf.mxu0
    %v990 = vadd.f32 0.0, %v989
    %991 = vdwg.mxu0
    %v992 = vadd.f32 %v965, %v990
    %v993 = vld [vmem:[#allocation3 + $0xc] sm:$0x3]
    %v994 = vld [vmem:[#allocation9] sm:$0xff]
    %v995 = vld [vmem:[#allocation9 + $0x8] sm:$0xff]
    %v996 = vld [vmem:[#allocation9 + $0x10] sm:$0xff]
    %v997 = vld [vmem:[#allocation9 + $0x18] sm:$0xff]
    %v998 = vsel %vm118, %v961, 0
    %1000 = vmatpush.msra.mxu0 0.0
    %1001 = vmatpush.msra.mxu0 0.0
    %1002 = vmatpush.msra.mxu0 0.0
    %1003 = vmatpush.msra.mxu0 0.0
    %1004 = vmatpush.msra.mxu0 0.0
    %1005 = vmatpush.msra.mxu0 0.0
    %1006 = vmatpush.msra.mxu0 0.0
    %1007 = vmatpush.msra.mxu0 0.0
    %1008 = vmatpush.msra.mxu0 0.0
    %1009 = vmatpush.msra.mxu0 0.0
    %1010 = vmatpush.msra.mxu0 0.0
    %1011 = vmatpush.msra.mxu0 0.0
    %1012 = vmatpush.msra.mxu0 %v997
    %1013 = vmatpush.msra.mxu0 %v996
    %1014 = vmatpush.msra.mxu0 %v995
    %1015 = vmatpush.msra.mxu0 %v994
    %1016 = vmatmul.f32.gmra.mxu0 %v998
    %v1017 = vpop.f32.mrf.mxu0
    %v1018 = vadd.f32 0.0, %v1017
    %1019 = vdwg.mxu0
    %v1020 = vadd.f32 %v993, %v1018
    %v1021 = vxor.u32 %v992, 2147483648
    %v1022 = vmul.f32 %v1021, 1.442695
    %v1023 = vpow.pop %v1022
    %v1024 = vadd.f32 %v1023, 1.0
    %v1025 = vrcp.pop %v1024
    %v1026 = vmul.f32 %v1024, %v1025
    %v1027 = vsub.f32 1.0, %v1026
    %v1028 = vmul.f32 %v1025, %v1027
    %v1029 = vadd.f32 %v1025, %v1028
    %vm1030 = vweird.f32 %v1024
    %vm1031 = vweird.f32 %v1025
    %vm1032 = vmor %vm1030, %vm1031
    %v1033 = vsel %vm1032, %v1025, %v1029
    %v1034 = vand.u32 2147483647, %v1024
    %vm1035 = vcmp.eq.f32.partialorder %v1034, 8.507059e+37
    %v1036 = vand.u32 %v1024, 2147483648
    %v1037 = vor.u32 1.1754944e-38, %v1036
    %v1038 = vsel %vm1035, %v1037, %v1033
    %v1039 = vmul.f32 1.0, %v1038
    %v1040 = vxor.u32 %v1020, 2147483648
    %v1041 = vmul.f32 %v1040, 1.442695
    %v1042 = vpow.pop %v1041
    %v1043 = vadd.f32 %v1042, 1.0
    %v1044 = vrcp.pop %v1043
    %v1045 = vmul.f32 %v1043, %v1044
    %v1046 = vsub.f32 1.0, %v1045
    %v1047 = vmul.f32 %v1044, %v1046
    %v1048 = vadd.f32 %v1044, %v1047
    %vm1049 = vweird.f32 %v1043
    %vm1050 = vweird.f32 %v1044
    %vm1051 = vmor %vm1049, %vm1050
    %v1052 = vsel %vm1051, %v1044, %v1048
    %v1053 = vand.u32 2147483647, %v1043
    %vm1054 = vcmp.eq.f32.partialorder %v1053, 8.507059e+37
    %v1055 = vand.u32 %v1043, 2147483648
    %v1056 = vor.u32 1.1754944e-38, %v1055
    %v1057 = vsel %vm1054, %v1056, %v1052
    %v1058 = vmul.f32 1.0, %v1057
    %v1059 = vtanh.pop %v992
    %v1060 = vtanh.pop %v1020
    %v1061 = vmul.f32 %v1039, %v929
    %1063 = vrot.lane.b32.xlu0 %v1059, 32
    %v1064 = vpop.permute.xlu0 %1063
    %v1066 = vmul.f32 %v1039, %v1064
    %1068 = vrot.lane.b32.xlu0 %v1066, 32
    %v1069 = vpop.permute.xlu0 %1068
    %v1071 = vadd.f32 %v1061, %v1069
    %v1072 = vmul.f32 %v1058, %v940
    %1074 = vrot.lane.b32.xlu0 %v1060, 32
    %v1075 = vpop.permute.xlu0 %1074
    %v1077 = vmul.f32 %v1058, %v1075
    %1079 = vrot.lane.b32.xlu0 %v1077, 32
    %v1080 = vpop.permute.xlu0 %1079
    %v1082 = vadd.f32 %v1072, %v1080
    %v1083 = vtanh.pop %v1071
    %1085 = vrot.lane.b32.xlu0 %v1083, 32
    %v1086 = vpop.permute.xlu0 %1085
    %v1088 = vmul.f32 %v1039, %v1086
    %v1089 = vtanh.pop %v1082
    %1091 = vrot.lane.b32.xlu0 %v1089, 32
    %v1092 = vpop.permute.xlu0 %1091
    %v1094 = vmul.f32 %v1058, %v1092
    %1096 = vrot.lane.b32.xlu0 %v1088, 64
    %v1097 = vpop.permute.xlu0 %1096
    %s1099 = scalar_lea.vmem [#allocation4], 12
    %1100 = vst.msk [vmem:[%s1099] sm:$0x3] %vm247, %v1097
    %1102 = vrot.lane.b32.xlu0 %v1094, 64
    %v1103 = vpop.permute.xlu0 %1102
    %s1105 = scalar_lea.vmem [#allocation5], 2
    %1106 = vst.msk [vmem:[%s1105] sm:$0x3] %vm247, %v1103
    %v1107 = vld [vmem:[#allocation2 + $0xe] sm:$0x3]
    %v1108 = vld [vmem:[#allocation6] sm:$0xff]
    %v1109 = vld [vmem:[#allocation6 + $0x8] sm:$0xff]
    %v1110 = vld [vmem:[#allocation6 + $0x10] sm:$0xff]
    %v1111 = vld [vmem:[#allocation6 + $0x18] sm:$0xff]
    %v1112 = vsel %vm118, %v1097, 0
    %1114 = vmatpush.msra.mxu0 0.0
    %1115 = vmatpush.msra.mxu0 0.0
    %1116 = vmatpush.msra.mxu0 0.0
    %1117 = vmatpush.msra.mxu0 0.0
    %1118 = vmatpush.msra.mxu0 0.0
    %1119 = vmatpush.msra.mxu0 0.0
    %1120 = vmatpush.msra.mxu0 0.0
    %1121 = vmatpush.msra.mxu0 0.0
    %1122 = vmatpush.msra.mxu0 0.0
    %1123 = vmatpush.msra.mxu0 0.0
    %1124 = vmatpush.msra.mxu0 0.0
    %1125 = vmatpush.msra.mxu0 0.0
    %1126 = vmatpush.msra.mxu0 %v1111
    %1127 = vmatpush.msra.mxu0 %v1110
    %1128 = vmatpush.msra.mxu0 %v1109
    %1129 = vmatpush.msra.mxu0 %v1108
    %1130 = vmatmul.f32.gmra.mxu0 %v1112
    %v1131 = vpop.f32.mrf.mxu0
    %v1132 = vadd.f32 0.0, %v1131
    %1133 = vdwg.mxu0
    %v1134 = vadd.f32 %v1107, %v1132
    %v1135 = vld [vmem:[#allocation3 + $0xe] sm:$0x3]
    %v1136 = vld [vmem:[#allocation9] sm:$0xff]
    %v1137 = vld [vmem:[#allocation9 + $0x8] sm:$0xff]
    %v1138 = vld [vmem:[#allocation9 + $0x10] sm:$0xff]
    %v1139 = vld [vmem:[#allocation9 + $0x18] sm:$0xff]
    %v1140 = vsel %vm118, %v1103, 0
    %1142 = vmatpush.msra.mxu0 0.0
    %1143 = vmatpush.msra.mxu0 0.0
    %1144 = vmatpush.msra.mxu0 0.0
    %1145 = vmatpush.msra.mxu0 0.0
    %1146 = vmatpush.msra.mxu0 0.0
    %1147 = vmatpush.msra.mxu0 0.0
    %1148 = vmatpush.msra.mxu0 0.0
    %1149 = vmatpush.msra.mxu0 0.0
    %1150 = vmatpush.msra.mxu0 0.0
    %1151 = vmatpush.msra.mxu0 0.0
    %1152 = vmatpush.msra.mxu0 0.0
    %1153 = vmatpush.msra.mxu0 0.0
    %1154 = vmatpush.msra.mxu0 %v1139
    %1155 = vmatpush.msra.mxu0 %v1138
    %1156 = vmatpush.msra.mxu0 %v1137
    %1157 = vmatpush.msra.mxu0 %v1136
    %1158 = vmatmul.f32.gmra.mxu0 %v1140
    %v1159 = vpop.f32.mrf.mxu0
    %v1160 = vadd.f32 0.0, %v1159
    %1161 = vdwg.mxu0
    %v1162 = vadd.f32 %v1135, %v1160
    %v1163 = vxor.u32 %v1134, 2147483648
    %v1164 = vmul.f32 %v1163, 1.442695
    %v1165 = vpow.pop %v1164
    %v1166 = vadd.f32 %v1165, 1.0
    %v1167 = vrcp.pop %v1166
    %v1168 = vmul.f32 %v1166, %v1167
    %v1169 = vsub.f32 1.0, %v1168
    %v1170 = vmul.f32 %v1167, %v1169
    %v1171 = vadd.f32 %v1167, %v1170
    %vm1172 = vweird.f32 %v1166
    %vm1173 = vweird.f32 %v1167
    %vm1174 = vmor %vm1172, %vm1173
    %v1175 = vsel %vm1174, %v1167, %v1171
    %v1176 = vand.u32 2147483647, %v1166
    %vm1177 = vcmp.eq.f32.partialorder %v1176, 8.507059e+37
    %v1178 = vand.u32 %v1166, 2147483648
    %v1179 = vor.u32 1.1754944e-38, %v1178
    %v1180 = vsel %vm1177, %v1179, %v1175
    %v1181 = vmul.f32 1.0, %v1180
    %v1182 = vxor.u32 %v1162, 2147483648
    %v1183 = vmul.f32 %v1182, 1.442695
    %v1184 = vpow.pop %v1183
    %v1185 = vadd.f32 %v1184, 1.0
    %v1186 = vrcp.pop %v1185
    %v1187 = vmul.f32 %v1185, %v1186
    %v1188 = vsub.f32 1.0, %v1187
    %v1189 = vmul.f32 %v1186, %v1188
    %v1190 = vadd.f32 %v1186, %v1189
    %vm1191 = vweird.f32 %v1185
    %vm1192 = vweird.f32 %v1186
    %vm1193 = vmor %vm1191, %vm1192
    %v1194 = vsel %vm1193, %v1186, %v1190
    %v1195 = vand.u32 2147483647, %v1185
    %vm1196 = vcmp.eq.f32.partialorder %v1195, 8.507059e+37
    %v1197 = vand.u32 %v1185, 2147483648
    %v1198 = vor.u32 1.1754944e-38, %v1197
    %v1199 = vsel %vm1196, %v1198, %v1194
    %v1200 = vmul.f32 1.0, %v1199
    %v1201 = vtanh.pop %v1134
    %v1202 = vtanh.pop %v1162
    %v1203 = vmul.f32 %v1181, %v1071
    %1205 = vrot.lane.b32.xlu0 %v1201, 32
    %v1206 = vpop.permute.xlu0 %1205
    %v1208 = vmul.f32 %v1181, %v1206
    %1210 = vrot.lane.b32.xlu0 %v1208, 32
    %v1211 = vpop.permute.xlu0 %1210
    %v1213 = vadd.f32 %v1203, %v1211
    %v1214 = vmul.f32 %v1200, %v1082
    %1216 = vrot.lane.b32.xlu0 %v1202, 32
    %v1217 = vpop.permute.xlu0 %1216
    %v1219 = vmul.f32 %v1200, %v1217
    %1221 = vrot.lane.b32.xlu0 %v1219, 32
    %v1222 = vpop.permute.xlu0 %1221
    %v1224 = vadd.f32 %v1214, %v1222
    %v1225 = vtanh.pop %v1213
    %1227 = vrot.lane.b32.xlu0 %v1225, 32
    %v1228 = vpop.permute.xlu0 %1227
    %v1230 = vmul.f32 %v1181, %v1228
    %v1231 = vtanh.pop %v1224
    %1233 = vrot.lane.b32.xlu0 %v1231, 32
    %v1234 = vpop.permute.xlu0 %1233
    %v1236 = vmul.f32 %v1200, %v1234
    %1238 = vrot.lane.b32.xlu0 %v1230, 64
    %v1239 = vpop.permute.xlu0 %1238
    %s1241 = scalar_lea.vmem [#allocation4], 14
    %1242 = vst.msk [vmem:[%s1241] sm:$0x3] %vm247, %v1239
    %1244 = vrot.lane.b32.xlu0 %v1236, 64
    %v1245 = vpop.permute.xlu0 %1244
    %1247 = vst.msk [vmem:[#allocation5] sm:$0x3] %vm247, %v1245
    %v1248 = vld [vmem:[#allocation4] sm:$0x3]
    %v1249 = vld [vmem:[#allocation4 + $0x2] sm:$0x3]
    %v1250 = vld [vmem:[#allocation4 + $0x4] sm:$0x3]
    %v1251 = vld [vmem:[#allocation4 + $0x6] sm:$0x3]
    %v1252 = vld [vmem:[#allocation4 + $0x8] sm:$0x3]
    %v1253 = vld [vmem:[#allocation4 + $0xa] sm:$0x3]
    %v1254 = vld [vmem:[#allocation4 + $0xc] sm:$0x3]
    %v1255 = vld [vmem:[#allocation4 + $0xe] sm:$0x3]
    %v1256 = vld [vmem:[#allocation5] sm:$0x3]
    %v1257 = vld [vmem:[#allocation5 + $0x2] sm:$0x3]
    %v1258 = vld [vmem:[#allocation5 + $0x4] sm:$0x3]
    %v1259 = vld [vmem:[#allocation5 + $0x6] sm:$0x3]
    %v1260 = vld [vmem:[#allocation5 + $0x8] sm:$0x3]
    %v1261 = vld [vmem:[#allocation5 + $0xa] sm:$0x3]
    %v1262 = vld [vmem:[#allocation5 + $0xc] sm:$0x3]
    %v1263 = vld [vmem:[#allocation5 + $0xe] sm:$0x3]
    %v1264 = vld [vmem:[%s7] sm:$0x1]
    %v1266 = vperm.slane %v1264, 0
    %v1268 = vmul.f32 %v1248, %v1266
    %v1269 = vmul.f32 %v1249, %v1266
    %v1270 = vmul.f32 %v1250, %v1266
    %v1271 = vmul.f32 %v1251, %v1266
    %v1272 = vmul.f32 %v1252, %v1266
    %v1273 = vmul.f32 %v1253, %v1266
    %v1274 = vmul.f32 %v1254, %v1266
    %v1275 = vmul.f32 %v1255, %v1266
    %v1276 = vsel %vm247, %v1268, 0.0
    %1277 = vadd.xlane.f32.xlu0 %v1276
    %v1278 = vpop.xlane.xlu0 %1277
    %v1279 = vsel %vm247, %v1269, 0.0
    %1280 = vadd.xlane.f32.xlu0 %v1279
    %v1281 = vpop.xlane.xlu0 %1280
    %v1282 = vsel %vm247, %v1270, 0.0
    %1283 = vadd.xlane.f32.xlu0 %v1282
    %v1284 = vpop.xlane.xlu0 %1283
    %v1285 = vsel %vm247, %v1271, 0.0
    %1286 = vadd.xlane.f32.xlu0 %v1285
    %v1287 = vpop.xlane.xlu0 %1286
    %v1288 = vsel %vm247, %v1272, 0.0
    %1289 = vadd.xlane.f32.xlu0 %v1288
    %v1290 = vpop.xlane.xlu0 %1289
    %v1291 = vsel %vm247, %v1273, 0.0
    %1292 = vadd.xlane.f32.xlu0 %v1291
    %v1293 = vpop.xlane.xlu0 %1292
    %v1294 = vsel %vm247, %v1274, 0.0
    %1295 = vadd.xlane.f32.xlu0 %v1294
    %v1296 = vpop.xlane.xlu0 %1295
    %v1297 = vsel %vm247, %v1275, 0.0
    %1298 = vadd.xlane.f32.xlu0 %v1297
    %v1299 = vpop.xlane.xlu0 %1298
    %v1300 = vld [vmem:[%s8] sm:$0x1]
    %v1302 = vperm.slane %v1300, 0
    %v1304 = vmul.f32 %v1256, %v1302
    %v1305 = vmul.f32 %v1257, %v1302
    %v1306 = vmul.f32 %v1258, %v1302
    %v1307 = vmul.f32 %v1259, %v1302
    %v1308 = vmul.f32 %v1260, %v1302
    %v1309 = vmul.f32 %v1261, %v1302
    %v1310 = vmul.f32 %v1262, %v1302
    %v1311 = vmul.f32 %v1263, %v1302
    %v1312 = vsel %vm247, %v1304, 0.0
    %1313 = vadd.xlane.f32.xlu0 %v1312
    %v1314 = vpop.xlane.xlu0 %1313
    %v1315 = vsel %vm247, %v1305, 0.0
    %1316 = vadd.xlane.f32.xlu0 %v1315
    %v1317 = vpop.xlane.xlu0 %1316
    %v1318 = vsel %vm247, %v1306, 0.0
    %1319 = vadd.xlane.f32.xlu0 %v1318
    %v1320 = vpop.xlane.xlu0 %1319
    %v1321 = vsel %vm247, %v1307, 0.0
    %1322 = vadd.xlane.f32.xlu0 %v1321
    %v1323 = vpop.xlane.xlu0 %1322
    %v1324 = vsel %vm247, %v1308, 0.0
    %1325 = vadd.xlane.f32.xlu0 %v1324
    %v1326 = vpop.xlane.xlu0 %1325
    %v1327 = vsel %vm247, %v1309, 0.0
    %1328 = vadd.xlane.f32.xlu0 %v1327
    %v1329 = vpop.xlane.xlu0 %1328
    %v1330 = vsel %vm247, %v1310, 0.0
    %1331 = vadd.xlane.f32.xlu0 %v1330
    %v1332 = vpop.xlane.xlu0 %1331
    %v1333 = vsel %vm247, %v1311, 0.0
    %1334 = vadd.xlane.f32.xlu0 %v1333
    %v1335 = vpop.xlane.xlu0 %1334
    %v1336 = vadd.f32 %v1278, %v1314
    %v1337 = vadd.f32 %v1281, %v1317
    %v1338 = vadd.f32 %v1284, %v1320
    %v1339 = vadd.f32 %v1287, %v1323
    %v1340 = vadd.f32 %v1290, %v1326
    %v1341 = vadd.f32 %v1293, %v1329
    %v1342 = vadd.f32 %v1296, %v1332
    %v1343 = vadd.f32 %v1299, %v1335
    %v1344 = vtanh.pop %v1336
    %v1345 = vtanh.pop %v1337
    %v1346 = vtanh.pop %v1338
    %v1347 = vtanh.pop %v1339
    %v1348 = vtanh.pop %v1340
    %v1349 = vtanh.pop %v1341
    %v1350 = vtanh.pop %v1342
    %v1351 = vtanh.pop %v1343
    %vm1352 = vcmask 1041408
    %v1353 = vsel %vm1352, %v1344, -inf
    %v1354 = vrot.slane %v1353, 4
    %v1355 = vmax.f32 %v1353, %v1354
    %v1356 = vrot.slane %v1355, 2
    %v1357 = vmax.f32 %v1355, %v1356
    %v1358 = vrot.slane %v1357, 1
    %v1359 = vmax.f32 %v1357, %v1358
    %v1360 = vsel %vm1352, %v1345, -inf
    %v1361 = vrot.slane %v1360, 4
    %v1362 = vmax.f32 %v1360, %v1361
    %v1363 = vrot.slane %v1362, 2
    %v1364 = vmax.f32 %v1362, %v1363
    %v1365 = vrot.slane %v1364, 1
    %v1366 = vmax.f32 %v1364, %v1365
    %v1367 = vsel %vm1352, %v1346, -inf
    %v1368 = vrot.slane %v1367, 4
    %v1369 = vmax.f32 %v1367, %v1368
    %v1370 = vrot.slane %v1369, 2
    %v1371 = vmax.f32 %v1369, %v1370
    %v1372 = vrot.slane %v1371, 1
    %v1373 = vmax.f32 %v1371, %v1372
    %v1374 = vsel %vm1352, %v1347, -inf
    %v1375 = vrot.slane %v1374, 4
    %v1376 = vmax.f32 %v1374, %v1375
    %v1377 = vrot.slane %v1376, 2
    %v1378 = vmax.f32 %v1376, %v1377
    %v1379 = vrot.slane %v1378, 1
    %v1380 = vmax.f32 %v1378, %v1379
    %v1381 = vsel %vm1352, %v1348, -inf
    %v1382 = vrot.slane %v1381, 4
    %v1383 = vmax.f32 %v1381, %v1382
    %v1384 = vrot.slane %v1383, 2
    %v1385 = vmax.f32 %v1383, %v1384
    %v1386 = vrot.slane %v1385, 1
    %v1387 = vmax.f32 %v1385, %v1386
    %v1388 = vsel %vm1352, %v1349, -inf
    %v1389 = vrot.slane %v1388, 4
    %v1390 = vmax.f32 %v1388, %v1389
    %v1391 = vrot.slane %v1390, 2
    %v1392 = vmax.f32 %v1390, %v1391
    %v1393 = vrot.slane %v1392, 1
    %v1394 = vmax.f32 %v1392, %v1393
    %v1395 = vsel %vm1352, %v1350, -inf
    %v1396 = vrot.slane %v1395, 4
    %v1397 = vmax.f32 %v1395, %v1396
    %v1398 = vrot.slane %v1397, 2
    %v1399 = vmax.f32 %v1397, %v1398
    %v1400 = vrot.slane %v1399, 1
    %v1401 = vmax.f32 %v1399, %v1400
    %v1402 = vsel %vm1352, %v1351, -inf
    %v1403 = vrot.slane %v1402, 4
    %v1404 = vmax.f32 %v1402, %v1403
    %v1405 = vrot.slane %v1404, 2
    %v1406 = vmax.f32 %v1404, %v1405
    %v1407 = vrot.slane %v1406, 1
    %v1408 = vmax.f32 %v1406, %v1407
    %v1409 = vsub.f32 %v1344, %v1359
    %v1410 = vsub.f32 %v1345, %v1366
    %v1411 = vsub.f32 %v1346, %v1373
    %v1412 = vsub.f32 %v1347, %v1380
    %v1413 = vsub.f32 %v1348, %v1387
    %v1414 = vsub.f32 %v1349, %v1394
    %v1415 = vsub.f32 %v1350, %v1401
    %v1416 = vsub.f32 %v1351, %v1408
    %v1417 = vmul.f32 %v1409, 1.442695
    %v1418 = vpow.pop %v1417
    %v1419 = vmul.f32 %v1410, 1.442695
    %v1420 = vpow.pop %v1419
    %v1421 = vmul.f32 %v1411, 1.442695
    %v1422 = vpow.pop %v1421
    %v1423 = vmul.f32 %v1412, 1.442695
    %v1424 = vpow.pop %v1423
    %v1425 = vmul.f32 %v1413, 1.442695
    %v1426 = vpow.pop %v1425
    %v1427 = vmul.f32 %v1414, 1.442695
    %v1428 = vpow.pop %v1427
    %v1429 = vmul.f32 %v1415, 1.442695
    %v1430 = vpow.pop %v1429
    %v1431 = vmul.f32 %v1416, 1.442695
    %v1432 = vpow.pop %v1431
    %v1433 = vsel %vm1352, %v1418, 0.0
    %v1434 = vrot.slane %v1433, 4
    %v1435 = vadd.f32 %v1433, %v1434
    %v1436 = vrot.slane %v1435, 2
    %v1437 = vadd.f32 %v1435, %v1436
    %v1438 = vrot.slane %v1437, 1
    %v1439 = vadd.f32 %v1437, %v1438
    %v1440 = vsel %vm1352, %v1420, 0.0
    %v1441 = vrot.slane %v1440, 4
    %v1442 = vadd.f32 %v1440, %v1441
    %v1443 = vrot.slane %v1442, 2
    %v1444 = vadd.f32 %v1442, %v1443
    %v1445 = vrot.slane %v1444, 1
    %v1446 = vadd.f32 %v1444, %v1445
    %v1447 = vsel %vm1352, %v1422, 0.0
    %v1448 = vrot.slane %v1447, 4
    %v1449 = vadd.f32 %v1447, %v1448
    %v1450 = vrot.slane %v1449, 2
    %v1451 = vadd.f32 %v1449, %v1450
    %v1452 = vrot.slane %v1451, 1
    %v1453 = vadd.f32 %v1451, %v1452
    %v1454 = vsel %vm1352, %v1424, 0.0
    %v1455 = vrot.slane %v1454, 4
    %v1456 = vadd.f32 %v1454, %v1455
    %v1457 = vrot.slane %v1456, 2
    %v1458 = vadd.f32 %v1456, %v1457
    %v1459 = vrot.slane %v1458, 1
    %v1460 = vadd.f32 %v1458, %v1459
    %v1461 = vsel %vm1352, %v1426, 0.0
    %v1462 = vrot.slane %v1461, 4
    %v1463 = vadd.f32 %v1461, %v1462
    %v1464 = vrot.slane %v1463, 2
    %v1465 = vadd.f32 %v1463, %v1464
    %v1466 = vrot.slane %v1465, 1
    %v1467 = vadd.f32 %v1465, %v1466
    %v1468 = vsel %vm1352, %v1428, 0.0
    %v1469 = vrot.slane %v1468, 4
    %v1470 = vadd.f32 %v1468, %v1469
    %v1471 = vrot.slane %v1470, 2
    %v1472 = vadd.f32 %v1470, %v1471
    %v1473 = vrot.slane %v1472, 1
    %v1474 = vadd.f32 %v1472, %v1473
    %v1475 = vsel %vm1352, %v1430, 0.0
    %v1476 = vrot.slane %v1475, 4
    %v1477 = vadd.f32 %v1475, %v1476
    %v1478 = vrot.slane %v1477, 2
    %v1479 = vadd.f32 %v1477, %v1478
    %v1480 = vrot.slane %v1479, 1
    %v1481 = vadd.f32 %v1479, %v1480
    %v1482 = vsel %vm1352, %v1432, 0.0
    %v1483 = vrot.slane %v1482, 4
    %v1484 = vadd.f32 %v1482, %v1483
    %v1485 = vrot.slane %v1484, 2
    %v1486 = vadd.f32 %v1484, %v1485
    %v1487 = vrot.slane %v1486, 1
    %v1488 = vadd.f32 %v1486, %v1487
    %v1489 = vrcp.pop %v1439
    %v1490 = vrcp.pop %v1446
    %v1491 = vrcp.pop %v1453
    %v1492 = vrcp.pop %v1460
    %v1493 = vrcp.pop %v1467
    %v1494 = vrcp.pop %v1474
    %v1495 = vrcp.pop %v1481
    %v1496 = vrcp.pop %v1488
    %v1497 = vmul.f32 %v1418, %v1489
    %v1498 = vmul.f32 %v1420, %v1490
    %v1499 = vmul.f32 %v1422, %v1491
    %v1500 = vmul.f32 %v1424, %v1492
    %v1501 = vmul.f32 %v1426, %v1493
    %v1502 = vmul.f32 %v1428, %v1494
    %v1503 = vmul.f32 %v1430, %v1495
    %v1504 = vmul.f32 %v1432, %v1496
    %v1505 = vmul.f32 %v1497, %v1248
    %v1506 = vmul.f32 %v1498, %v1249
    %v1507 = vmul.f32 %v1499, %v1250
    %v1508 = vmul.f32 %v1500, %v1251
    %v1509 = vmul.f32 %v1501, %v1252
    %v1510 = vmul.f32 %v1502, %v1253
    %v1511 = vmul.f32 %v1503, %v1254
    %v1512 = vmul.f32 %v1504, %v1255
    %v1513 = vsel %vm247, %v1505, 0.0
    %v1514 = vrot.slane %v1513, 4
    %v1515 = vadd.f32 %v1513, %v1514
    %v1516 = vrot.slane %v1515, 2
    %v1517 = vadd.f32 %v1515, %v1516
    %v1518 = vrot.slane %v1517, 1
    %v1519 = vadd.f32 %v1517, %v1518
    %v1520 = vsel %vm247, %v1506, 0.0
    %v1521 = vrot.slane %v1520, 4
    %v1522 = vadd.f32 %v1520, %v1521
    %v1523 = vrot.slane %v1522, 2
    %v1524 = vadd.f32 %v1522, %v1523
    %v1525 = vrot.slane %v1524, 1
    %v1526 = vadd.f32 %v1524, %v1525
    %v1527 = vsel %vm247, %v1507, 0.0
    %v1528 = vrot.slane %v1527, 4
    %v1529 = vadd.f32 %v1527, %v1528
    %v1530 = vrot.slane %v1529, 2
    %v1531 = vadd.f32 %v1529, %v1530
    %v1532 = vrot.slane %v1531, 1
    %v1533 = vadd.f32 %v1531, %v1532
    %v1534 = vsel %vm247, %v1508, 0.0
    %v1535 = vrot.slane %v1534, 4
    %v1536 = vadd.f32 %v1534, %v1535
    %v1537 = vrot.slane %v1536, 2
    %v1538 = vadd.f32 %v1536, %v1537
    %v1539 = vrot.slane %v1538, 1
    %v1540 = vadd.f32 %v1538, %v1539
    %v1541 = vsel %vm247, %v1509, 0.0
    %v1542 = vrot.slane %v1541, 4
    %v1543 = vadd.f32 %v1541, %v1542
    %v1544 = vrot.slane %v1543, 2
    %v1545 = vadd.f32 %v1543, %v1544
    %v1546 = vrot.slane %v1545, 1
    %v1547 = vadd.f32 %v1545, %v1546
    %v1548 = vsel %vm247, %v1510, 0.0
    %v1549 = vrot.slane %v1548, 4
    %v1550 = vadd.f32 %v1548, %v1549
    %v1551 = vrot.slane %v1550, 2
    %v1552 = vadd.f32 %v1550, %v1551
    %v1553 = vrot.slane %v1552, 1
    %v1554 = vadd.f32 %v1552, %v1553
    %v1555 = vsel %vm247, %v1511, 0.0
    %v1556 = vrot.slane %v1555, 4
    %v1557 = vadd.f32 %v1555, %v1556
    %v1558 = vrot.slane %v1557, 2
    %v1559 = vadd.f32 %v1557, %v1558
    %v1560 = vrot.slane %v1559, 1
    %v1561 = vadd.f32 %v1559, %v1560
    %v1562 = vsel %vm247, %v1512, 0.0
    %v1563 = vrot.slane %v1562, 4
    %v1564 = vadd.f32 %v1562, %v1563
    %v1565 = vrot.slane %v1564, 2
    %v1566 = vadd.f32 %v1564, %v1565
    %v1567 = vrot.slane %v1566, 1
    %v1568 = vadd.f32 %v1566, %v1567
    %vm1577 = vcmask 1041409
    %v1578 = vsel %vm1577, %v1526, %v1519
    %vm1579 = vcmask 1042434
    %v1580 = vsel %vm1579, %v1533, %v1578
    %vm1581 = vcmask 1043459
    %v1582 = vsel %vm1581, %v1540, %v1580
    %vm1583 = vcmask 1044484
    %v1584 = vsel %vm1583, %v1547, %v1582
    %vm1585 = vcmask 1045509
    %v1586 = vsel %vm1585, %v1554, %v1584
    %vm1587 = vcmask 1046534
    %v1588 = vsel %vm1587, %v1561, %v1586
    %vm1589 = vcmask 1047559
    %v1590 = vsel %vm1589, %v1568, %v1588
    %1592 = vst.msk [vmem:[#allocation11] sm:$0xff] %vm118, %v1590
    %v1593 = vmul.f32 %v1497, %v1256
    %v1594 = vmul.f32 %v1498, %v1257
    %v1595 = vmul.f32 %v1499, %v1258
    %v1596 = vmul.f32 %v1500, %v1259
    %v1597 = vmul.f32 %v1501, %v1260
    %v1598 = vmul.f32 %v1502, %v1261
    %v1599 = vmul.f32 %v1503, %v1262
    %v1600 = vmul.f32 %v1504, %v1263
    %v1601 = vsel %vm247, %v1593, 0.0
    %v1602 = vrot.slane %v1601, 4
    %v1603 = vadd.f32 %v1601, %v1602
    %v1604 = vrot.slane %v1603, 2
    %v1605 = vadd.f32 %v1603, %v1604
    %v1606 = vrot.slane %v1605, 1
    %v1607 = vadd.f32 %v1605, %v1606
    %v1608 = vsel %vm247, %v1594, 0.0
    %v1609 = vrot.slane %v1608, 4
    %v1610 = vadd.f32 %v1608, %v1609
    %v1611 = vrot.slane %v1610, 2
    %v1612 = vadd.f32 %v1610, %v1611
    %v1613 = vrot.slane %v1612, 1
    %v1614 = vadd.f32 %v1612, %v1613
    %v1615 = vsel %vm247, %v1595, 0.0
    %v1616 = vrot.slane %v1615, 4
    %v1617 = vadd.f32 %v1615, %v1616
    %v1618 = vrot.slane %v1617, 2
    %v1619 = vadd.f32 %v1617, %v1618
    %v1620 = vrot.slane %v1619, 1
    %v1621 = vadd.f32 %v1619, %v1620
    %v1622 = vsel %vm247, %v1596, 0.0
    %v1623 = vrot.slane %v1622, 4
    %v1624 = vadd.f32 %v1622, %v1623
    %v1625 = vrot.slane %v1624, 2
    %v1626 = vadd.f32 %v1624, %v1625
    %v1627 = vrot.slane %v1626, 1
    %v1628 = vadd.f32 %v1626, %v1627
    %v1629 = vsel %vm247, %v1597, 0.0
    %v1630 = vrot.slane %v1629, 4
    %v1631 = vadd.f32 %v1629, %v1630
    %v1632 = vrot.slane %v1631, 2
    %v1633 = vadd.f32 %v1631, %v1632
    %v1634 = vrot.slane %v1633, 1
    %v1635 = vadd.f32 %v1633, %v1634
    %v1636 = vsel %vm247, %v1598, 0.0
    %v1637 = vrot.slane %v1636, 4
    %v1638 = vadd.f32 %v1636, %v1637
    %v1639 = vrot.slane %v1638, 2
    %v1640 = vadd.f32 %v1638, %v1639
    %v1641 = vrot.slane %v1640, 1
    %v1642 = vadd.f32 %v1640, %v1641
    %v1643 = vsel %vm247, %v1599, 0.0
    %v1644 = vrot.slane %v1643, 4
    %v1645 = vadd.f32 %v1643, %v1644
    %v1646 = vrot.slane %v1645, 2
    %v1647 = vadd.f32 %v1645, %v1646
    %v1648 = vrot.slane %v1647, 1
    %v1649 = vadd.f32 %v1647, %v1648
    %v1650 = vsel %vm247, %v1600, 0.0
    %v1651 = vrot.slane %v1650, 4
    %v1652 = vadd.f32 %v1650, %v1651
    %v1653 = vrot.slane %v1652, 2
    %v1654 = vadd.f32 %v1652, %v1653
    %v1655 = vrot.slane %v1654, 1
    %v1656 = vadd.f32 %v1654, %v1655
    %v1665 = vsel %vm1577, %v1614, %v1607
    %v1666 = vsel %vm1579, %v1621, %v1665
    %v1667 = vsel %vm1581, %v1628, %v1666
    %v1668 = vsel %vm1583, %v1635, %v1667
    %v1669 = vsel %vm1585, %v1642, %v1668
    %v1670 = vsel %vm1587, %v1649, %v1669
    %v1671 = vsel %vm1589, %v1656, %v1670
    %1672 = vrot.lane.b32.xlu0 %v1671, 32
    %v1673 = vpop.permute.xlu0 %1672
    %vm1675 = vcmask 523520
    %1676 = vst.msk [vmem:[#allocation11] sm:$0xff] %vm1675, %v1673
    // Predicated region
    $region46: #{tpu_custom_call.1} parent=1 // pred_check
      _
    $region47: #{tpu_custom_call.1} parent=1 // pred_check_branch
      %1678 = sbr.rel (0) target = $region49
    $region48: #{tpu_custom_call.1} parent=1 // pred_region
      %1680 = vsyncadd [#allocation8], 0
      %s1682 = sshll.u32 [#allocation11], 4
      %s1683 = int_to_ptr.vmem [resolvable:$true] %s1682
      %s1684 = sshll.u32 %s9, 4
      %s1685 = int_to_ptr.hbm [resolvable:$true] %s1684
      %1687 = dma.vmem_to_hbm [thread:$0]  %s1683, 128, %s1685, [#allocation8]
    $region49: #{tpu_custom_call.1} parent=1 // pred_fallthru
      _
    // Predicated region
    $region50: #{tpu_custom_call.1} parent=1 // pred_check
      _
    $region51: #{tpu_custom_call.1} parent=1 // pred_check_branch
      %1689 = sbr.rel (0) target = $region53
    $region52: #{tpu_custom_call.1} parent=1 // pred_region
      %1691 = dma.done [#allocation8], 128
    $region53: #{tpu_custom_call.1} parent=1 // pred_fallthru
      _
    %1692 = vsyncpa [#allocation7], 1
    %1693 = vsyncpa [#allocation10], 1
    %1694 = vsyncpa [#allocation8], 1

</llo_original>
